<compile_context>
chip_gen: v7x
topology: tpu7x:2x2x1
jax: 0.10.0
libtpu: 0.0.40
codegen_flags: <defaults>
</compile_context>

<pallas_src>
import functools

import jax
import jax.numpy as jnp
from jax.experimental import pallas as pl
from jax.experimental.pallas import tpu as pltpu


def _gelu(x):
    # exact (erf) GELU, matching torch.nn.GELU default
    return 0.5 * x * (1.0 + jax.lax.erf(x * 0.7071067811865476))


def _conv_mixer_stack_kernel(x_ref, dww_ref, dwb_ref, pww_ref, pwb_ref,
                             o_ref, xpad_ref, *, k):
    """One grid step = one ConvMixer block; activation stays in xpad_ref.

    x_ref    : (N, H, W, C)          input (read only at d == 0)
    dww_ref  : (1, k*k, C)           depthwise weights of block d (tap-major)
    dwb_ref  : (1, 1, C)             depthwise bias of block d
    pww_ref  : (1, C, C)             pointwise weights of block d, (in, out)
    pwb_ref  : (1, 1, C)             pointwise bias of block d
    o_ref    : (N, H, W, C)          output (written only at the last d)
    xpad_ref : (N, H+2p, W+2p, C)    VMEM scratch: zero border, activation in
                                     the interior, carried across blocks
    """
    N, H, W, C = o_ref.shape
    p = k // 2
    eps = jnp.float32(1e-5)
    d = pl.program_id(0)

    @pl.when(d == 0)
    def _init():
        xpad_ref[...] = jnp.zeros(xpad_ref.shape, xpad_ref.dtype)
        xpad_ref[:, p:p + H, p:p + W, :] = x_ref[...].astype(jnp.float32)

    dww = dww_ref[0]          # (k*k, C)
    dwb = dwb_ref[0]          # (1, C)
    pww = pww_ref[0]          # (C, C)
    pwb = pwb_ref[0]          # (1, C)

    # ---- depthwise k x k conv ('same', groups=C) ----
    # accumulator seeded with tap (0,0) and the bias: no zero-fill / bias pass.
    acc = (xpad_ref[:, 0:H, 0:W, :] * dww[0].reshape(1, 1, 1, C)
           + dwb.reshape(1, 1, 1, C))
    for dy in range(k):
        for dx in range(k):
            if dy == 0 and dx == 0:
                continue
            acc = acc + (xpad_ref[:, dy:dy + H, dx:dx + W, :]
                         * dww[dy * k + dx].reshape(1, 1, 1, C))

    # GELU -> BatchNorm2d (batch stats, single pass) fused with the residual.
    h = _gelu(acc)
    cnt = jnp.float32(N * H * W)
    s = jnp.sum(h, axis=(0, 1, 2), keepdims=True)
    ss = jnp.sum(h * h, axis=(0, 1, 2), keepdims=True)
    mean = s / cnt
    var = ss / cnt - mean * mean
    h = (h - mean) * jax.lax.rsqrt(var + eps) + xpad_ref[:, p:p + H, p:p + W, :]

    # ---- pointwise 1x1 conv: MXU matmul, bf16 operands, f32 accumulate ----
    hf = h.reshape(N * H * W, C)
    y = jnp.dot(hf.astype(jnp.bfloat16), pww.astype(jnp.bfloat16),
                preferred_element_type=jnp.float32)
    y = y + pwb

    # GELU -> BatchNorm2d (single pass)
    y = _gelu(y)
    s2 = jnp.sum(y, axis=0, keepdims=True)
    ss2 = jnp.sum(y * y, axis=0, keepdims=True)
    mean2 = s2 / cnt
    var2 = ss2 / cnt - mean2 * mean2
    y = (y - mean2) * jax.lax.rsqrt(var2 + eps)

    y4 = y.reshape(N, H, W, C)
    # keep the activation resident (scratch interior) for the next block
    xpad_ref[:, p:p + H, p:p + W, :] = y4

    @pl.when(d == pl.num_programs(0) - 1)
    def _finalize():
        o_ref[...] = y4.astype(o_ref.dtype)


@functools.partial(jax.jit, static_argnames=("kernel_size",))
def conv_mixer_layer(x_nchw, params, *, kernel_size):
    """Forward pass of Conv_Mixer_Layer.  x_nchw: (N, C, H, W) like PyTorch."""
    k = kernel_size
    p = k // 2
    depth = len(params)

    # Stack per-block weights along a leading depth axis (pipelined per block).
    dw_w = jnp.stack([pr[0] for pr in params])   # (depth, k*k, C)
    dw_b = jnp.stack([pr[1] for pr in params])   # (depth, 1, C)
    pw_w = jnp.stack([pr[2] for pr in params])   # (depth, C, C)
    pw_b = jnp.stack([pr[3] for pr in params])   # (depth, 1, C)

    x = jnp.transpose(x_nchw, (0, 2, 3, 1))      # NHWC: C -> lanes
    N, H, W, C = x.shape
    Hp, Wp = H + 2 * p, W + 2 * p

    # VMEM budget: resident padded activation + double-buffered I/O blocks +
    # per-block weights + headroom for in-flight f32 temporaries.
    fsz = 4
    act = N * H * W * C * fsz
    vmem_est = (N * Hp * Wp * C * fsz
                + 4 * act
                + 4 * (k * k * C + 2 * C + C * C) * fsz
                + 8 * act)
    vmem_limit = int(min(100 * 2**20, max(32 * 2**20, 2 * vmem_est)))

    out = pl.pallas_call(
        functools.partial(_conv_mixer_stack_kernel, k=k),
        out_shape=jax.ShapeDtypeStruct((N, H, W, C), x.dtype),
        grid=(depth,),
        in_specs=[
            pl.BlockSpec((N, H, W, C), lambda d: (0, 0, 0, 0)),   # x (once)
            pl.BlockSpec((1, k * k, C), lambda d: (d, 0, 0)),     # dw weights
            pl.BlockSpec((1, 1, C), lambda d: (d, 0, 0)),         # dw bias
            pl.BlockSpec((1, C, C), lambda d: (d, 0, 0)),         # pw weights
            pl.BlockSpec((1, 1, C), lambda d: (d, 0, 0)),         # pw bias
        ],
        out_specs=pl.BlockSpec((N, H, W, C), lambda d: (0, 0, 0, 0)),
        scratch_shapes=[pltpu.VMEM((N, Hp, Wp, C), jnp.float32)],
        compiler_params=pltpu.CompilerParams(
            dimension_semantics=("arbitrary",),
            vmem_limit_bytes=vmem_limit),
    )(x, dw_w, dw_b, pw_w, pw_b)

    return jnp.transpose(out, (0, 3, 1, 2))      # back to NCHW


def reference_conv_mixer(x_nchw, params, *, kernel_size):
    """Pure-JAX reference (matches kernel precision: bf16 MXU matmul)."""
    k = kernel_size
    p = k // 2
    eps = jnp.float32(1e-5)
    x = jnp.transpose(x_nchw, (0, 2, 3, 1)).astype(jnp.float32)
    for dw_w, dw_b, pw_w, pw_b in params:
        N, H, W, C = x.shape
        xpad = jnp.pad(x, ((0, 0), (p, p), (p, p), (0, 0)))
        acc = jnp.zeros((N, H, W, C), jnp.float32)
        for dy in range(k):
            for dx in range(k):
                acc = acc + (xpad[:, dy:dy + H, dx:dx + W, :]
                             * dw_w[dy * k + dx].reshape(1, 1, 1, C))
        acc = acc + dw_b.reshape(1, 1, 1, C)
        h = _gelu(acc)
        mean = jnp.mean(h, axis=(0, 1, 2), keepdims=True)
        var = jnp.mean((h - mean) ** 2, axis=(0, 1, 2), keepdims=True)
        h = (h - mean) * jax.lax.rsqrt(var + eps) + x
        hf = h.reshape(-1, C)
        y = jnp.dot(hf.astype(jnp.bfloat16), pw_w.astype(jnp.bfloat16),
                    preferred_element_type=jnp.float32) + pw_b
        y = _gelu(y)
        m2 = jnp.mean(y, axis=0, keepdims=True)
        v2 = jnp.mean((y - m2) ** 2, axis=0, keepdims=True)
        y = (y - m2) * jax.lax.rsqrt(v2 + eps)
        x = y.reshape(N, H, W, C)
    return jnp.transpose(x, (0, 3, 1, 2))


def init_params(key, dim, depth, kernel_size):
    """Deterministic synthetic parameters for each of the `depth` blocks."""
    params = []
    k = kernel_size
    for d in range(depth):
        kd = jax.random.fold_in(key, d)
        k1, k2, k3, k4 = jax.random.split(kd, 4)
        # depthwise conv weight: torch (dim,1,k,k) -> (k*k, dim), tap-major
        dw_w = (jax.random.normal(k1, (k * k, dim), jnp.float32)
                * (1.0 / (k * k)))
        dw_b = jax.random.normal(k2, (1, dim), jnp.float32) * 0.1
        # pointwise conv weight: torch (out,in,1,1) -> stored transposed (in,out)
        pw_w = (jax.random.normal(k3, (dim, dim), jnp.float32)
                * (1.0 / jnp.sqrt(dim)))
        pw_b = jax.random.normal(k4, (1, dim), jnp.float32) * 0.1
        params.append((dw_w, dw_b, pw_w, pw_b))
    return params


if __name__ == "__main__":
    # small shapes: batch=2, dim=16 channels, 8x8 spatial, depth=2, kernel 3x3
    N, DIM, H, W = 2, 16, 8, 8
    DEPTH, KSIZE = 2, 3

    key = jax.random.PRNGKey(0)
    kx, kp = jax.random.split(key)
    x = jax.random.normal(kx, (N, DIM, H, W), jnp.float32)  # NCHW like PyTorch
    params = init_params(kp, DIM, DEPTH, KSIZE)

    out = conv_mixer_layer(x, params, kernel_size=KSIZE)
    out = jax.block_until_ready(out)

    assert out.shape == (N, DIM, H, W)
    assert bool(jnp.all(jnp.isfinite(out)))

    ref = reference_conv_mixer(x, params, kernel_size=KSIZE)
    assert bool(jnp.allclose(out, ref, atol=2e-2, rtol=2e-2)), (
        float(jnp.max(jnp.abs(out - ref))))
    print("KERNEL_OK")
</pallas_src>

<mosaic_0001>
module attributes {stable_mosaic.version = 11 : i64} {
  func.func @_conv_mixer_stack_kernel(%arg0: i32, %arg1: memref<2x8x8x16xf32, #tpu.memory_space<vmem>>, %arg2: memref<1x9x16xf32, #tpu.memory_space<vmem>>, %arg3: memref<1x1x16xf32, #tpu.memory_space<vmem>>, %arg4: memref<1x16x16xf32, #tpu.memory_space<vmem>>, %arg5: memref<1x1x16xf32, #tpu.memory_space<vmem>>, %arg6: memref<2x8x8x16xf32, #tpu.memory_space<vmem>>, %arg7: memref<2x10x10x16xf32, #tpu.memory_space<vmem>>) attributes {dimension_semantics = [#tpu.dimension_semantics<arbitrary>], iteration_bounds = array<i64: 2>, scalar_prefetch = 0 : i64, scratch_operands = 1 : i64, tpu.core_type = #tpu.core_type<tc>, window_params = [{pipeline_mode = #tpu.pipeline_mode<synchronous>, transform_indices = @transform_0, window_bounds = array<i64: 2, 8, 8, 16>}, {transform_indices = @transform_1, window_bounds = array<i64: 1, 9, 16>}, {transform_indices = @transform_2, window_bounds = array<i64: 1, 1, 16>}, {transform_indices = @transform_3, window_bounds = array<i64: 1, 16, 16>}, {transform_indices = @transform_4, window_bounds = array<i64: 1, 1, 16>}, {pipeline_mode = #tpu.pipeline_mode<synchronous>, transform_indices = @transform_5, window_bounds = array<i64: 2, 8, 8, 16>}]} {
    %c0_i32 = arith.constant 0 : i32
    %0 = arith.cmpi eq, %arg0, %c0_i32 : i32
    %1 = arith.extui %0 : i1 to i32
    %c0_i32_0 = arith.constant 0 : i32
    %2 = arith.cmpi ne, %1, %c0_i32_0 : i32
    scf.if %2 {
      %cst_71 = arith.constant 0.000000e+00 : f32
      %141 = vector.broadcast %cst_71 : f32 to vector<2x10x10x16xf32>
      %c0_72 = arith.constant 0 : index
      %c0_73 = arith.constant 0 : index
      %c0_74 = arith.constant 0 : index
      %c0_75 = arith.constant 0 : index
      %142 = vector.load %arg7[%c0_72, %c0_73, %c0_74, %c0_75] : memref<2x10x10x16xf32, #tpu.memory_space<vmem>>, vector<2x10x10x16xf32>
      tpu.vector_store %arg7[%c0_72, %c0_73, %c0_74, %c0_75], %141 {strides = array<i32>} : memref<2x10x10x16xf32, #tpu.memory_space<vmem>>, vector<2x10x10x16xf32>,
      %c0_76 = arith.constant 0 : index
      %c0_77 = arith.constant 0 : index
      %c0_78 = arith.constant 0 : index
      %c0_79 = arith.constant 0 : index
      %143 = vector.load %arg1[%c0_76, %c0_77, %c0_78, %c0_79] : memref<2x8x8x16xf32, #tpu.memory_space<vmem>>, vector<2x8x8x16xf32>
      %c0_80 = arith.constant 0 : index
      %c1_81 = arith.constant 1 : index
      %c1_82 = arith.constant 1 : index
      %c0_83 = arith.constant 0 : index
      %144 = vector.load %arg7[%c0_80, %c1_81, %c1_82, %c0_83] : memref<2x10x10x16xf32, #tpu.memory_space<vmem>>, vector<2x8x8x16xf32>
      tpu.vector_store %arg7[%c0_80, %c1_81, %c1_82, %c0_83], %143 {strides = array<i32>} : memref<2x10x10x16xf32, #tpu.memory_space<vmem>>, vector<2x8x8x16xf32>,
    } else {
    }
    %c0 = arith.constant 0 : index
    %c0_1 = arith.constant 0 : index
    %c0_2 = arith.constant 0 : index
    %3 = vector.load %arg2[%c0, %c0_1, %c0_2] : memref<1x9x16xf32, #tpu.memory_space<vmem>>, vector<1x9x16xf32>
    %4 = vector.shape_cast %3 : vector<1x9x16xf32> to vector<9x16xf32>
    %c0_3 = arith.constant 0 : index
    %c0_4 = arith.constant 0 : index
    %c0_5 = arith.constant 0 : index
    %5 = vector.load %arg3[%c0_3, %c0_4, %c0_5] : memref<1x1x16xf32, #tpu.memory_space<vmem>>, vector<1x1x16xf32>
    %6 = vector.shape_cast %5 : vector<1x1x16xf32> to vector<1x16xf32>
    %c0_6 = arith.constant 0 : index
    %c0_7 = arith.constant 0 : index
    %c0_8 = arith.constant 0 : index
    %7 = vector.load %arg4[%c0_6, %c0_7, %c0_8] : memref<1x16x16xf32, #tpu.memory_space<vmem>>, vector<1x16x16xf32>
    %8 = vector.shape_cast %7 : vector<1x16x16xf32> to vector<16x16xf32>
    %c0_9 = arith.constant 0 : index
    %c0_10 = arith.constant 0 : index
    %c0_11 = arith.constant 0 : index
    %9 = vector.load %arg5[%c0_9, %c0_10, %c0_11] : memref<1x1x16xf32, #tpu.memory_space<vmem>>, vector<1x1x16xf32>
    %10 = vector.shape_cast %9 : vector<1x1x16xf32> to vector<1x16xf32>
    %c0_12 = arith.constant 0 : index
    %c0_13 = arith.constant 0 : index
    %c0_14 = arith.constant 0 : index
    %c0_15 = arith.constant 0 : index
    %11 = vector.load %arg7[%c0_12, %c0_13, %c0_14, %c0_15] : memref<2x10x10x16xf32, #tpu.memory_space<vmem>>, vector<2x8x8x16xf32>
    %12 = vector.extract_strided_slice %4 {offsets = [0, 0], sizes = [1, 16], strides = [1, 1]} : vector<9x16xf32> to vector<1x16xf32>
    %13 = vector.shape_cast %12 : vector<1x16xf32> to vector<16xf32>
    %14 = vector.shape_cast %13 : vector<16xf32> to vector<1x1x1x16xf32>
    %15 = vector.broadcast %14 : vector<1x1x1x16xf32> to vector<2x8x8x16xf32>
    %16 = arith.mulf %11, %15 : vector<2x8x8x16xf32>
    %17 = vector.shape_cast %6 : vector<1x16xf32> to vector<1x1x1x16xf32>
    %18 = vector.broadcast %17 : vector<1x1x1x16xf32> to vector<2x8x8x16xf32>
    %19 = arith.addf %16, %18 : vector<2x8x8x16xf32>
    %c0_16 = arith.constant 0 : index
    %c0_17 = arith.constant 0 : index
    %c1 = arith.constant 1 : index
    %c0_18 = arith.constant 0 : index
    %20 = vector.load %arg7[%c0_16, %c0_17, %c1, %c0_18] : memref<2x10x10x16xf32, #tpu.memory_space<vmem>>, vector<2x8x8x16xf32>
    %21 = vector.extract_strided_slice %4 {offsets = [1, 0], sizes = [1, 16], strides = [1, 1]} : vector<9x16xf32> to vector<1x16xf32>
    %22 = vector.shape_cast %21 : vector<1x16xf32> to vector<16xf32>
    %23 = vector.shape_cast %22 : vector<16xf32> to vector<1x1x1x16xf32>
    %24 = vector.broadcast %23 : vector<1x1x1x16xf32> to vector<2x8x8x16xf32>
    %25 = arith.mulf %20, %24 : vector<2x8x8x16xf32>
    %26 = arith.addf %19, %25 : vector<2x8x8x16xf32>
    %c0_19 = arith.constant 0 : index
    %c0_20 = arith.constant 0 : index
    %c2 = arith.constant 2 : index
    %c0_21 = arith.constant 0 : index
    %27 = vector.load %arg7[%c0_19, %c0_20, %c2, %c0_21] : memref<2x10x10x16xf32, #tpu.memory_space<vmem>>, vector<2x8x8x16xf32>
    %28 = vector.extract_strided_slice %4 {offsets = [2, 0], sizes = [1, 16], strides = [1, 1]} : vector<9x16xf32> to vector<1x16xf32>
    %29 = vector.shape_cast %28 : vector<1x16xf32> to vector<16xf32>
    %30 = vector.shape_cast %29 : vector<16xf32> to vector<1x1x1x16xf32>
    %31 = vector.broadcast %30 : vector<1x1x1x16xf32> to vector<2x8x8x16xf32>
    %32 = arith.mulf %27, %31 : vector<2x8x8x16xf32>
    %33 = arith.addf %26, %32 : vector<2x8x8x16xf32>
    %c0_22 = arith.constant 0 : index
    %c1_23 = arith.constant 1 : index
    %c0_24 = arith.constant 0 : index
    %c0_25 = arith.constant 0 : index
    %34 = vector.load %arg7[%c0_22, %c1_23, %c0_24, %c0_25] : memref<2x10x10x16xf32, #tpu.memory_space<vmem>>, vector<2x8x8x16xf32>
    %35 = vector.extract_strided_slice %4 {offsets = [3, 0], sizes = [1, 16], strides = [1, 1]} : vector<9x16xf32> to vector<1x16xf32>
    %36 = vector.shape_cast %35 : vector<1x16xf32> to vector<16xf32>
    %37 = vector.shape_cast %36 : vector<16xf32> to vector<1x1x1x16xf32>
    %38 = vector.broadcast %37 : vector<1x1x1x16xf32> to vector<2x8x8x16xf32>
    %39 = arith.mulf %34, %38 : vector<2x8x8x16xf32>
    %40 = arith.addf %33, %39 : vector<2x8x8x16xf32>
    %c0_26 = arith.constant 0 : index
    %c1_27 = arith.constant 1 : index
    %c1_28 = arith.constant 1 : index
    %c0_29 = arith.constant 0 : index
    %41 = vector.load %arg7[%c0_26, %c1_27, %c1_28, %c0_29] : memref<2x10x10x16xf32, #tpu.memory_space<vmem>>, vector<2x8x8x16xf32>
    %42 = vector.extract_strided_slice %4 {offsets = [4, 0], sizes = [1, 16], strides = [1, 1]} : vector<9x16xf32> to vector<1x16xf32>
    %43 = vector.shape_cast %42 : vector<1x16xf32> to vector<16xf32>
    %44 = vector.shape_cast %43 : vector<16xf32> to vector<1x1x1x16xf32>
    %45 = vector.broadcast %44 : vector<1x1x1x16xf32> to vector<2x8x8x16xf32>
    %46 = arith.mulf %41, %45 : vector<2x8x8x16xf32>
    %47 = arith.addf %40, %46 : vector<2x8x8x16xf32>
    %c0_30 = arith.constant 0 : index
    %c1_31 = arith.constant 1 : index
    %c2_32 = arith.constant 2 : index
    %c0_33 = arith.constant 0 : index
    %48 = vector.load %arg7[%c0_30, %c1_31, %c2_32, %c0_33] : memref<2x10x10x16xf32, #tpu.memory_space<vmem>>, vector<2x8x8x16xf32>
    %49 = vector.extract_strided_slice %4 {offsets = [5, 0], sizes = [1, 16], strides = [1, 1]} : vector<9x16xf32> to vector<1x16xf32>
    %50 = vector.shape_cast %49 : vector<1x16xf32> to vector<16xf32>
    %51 = vector.shape_cast %50 : vector<16xf32> to vector<1x1x1x16xf32>
    %52 = vector.broadcast %51 : vector<1x1x1x16xf32> to vector<2x8x8x16xf32>
    %53 = arith.mulf %48, %52 : vector<2x8x8x16xf32>
    %54 = arith.addf %47, %53 : vector<2x8x8x16xf32>
    %c0_34 = arith.constant 0 : index
    %c2_35 = arith.constant 2 : index
    %c0_36 = arith.constant 0 : index
    %c0_37 = arith.constant 0 : index
    %55 = vector.load %arg7[%c0_34, %c2_35, %c0_36, %c0_37] : memref<2x10x10x16xf32, #tpu.memory_space<vmem>>, vector<2x8x8x16xf32>
    %56 = vector.extract_strided_slice %4 {offsets = [6, 0], sizes = [1, 16], strides = [1, 1]} : vector<9x16xf32> to vector<1x16xf32>
    %57 = vector.shape_cast %56 : vector<1x16xf32> to vector<16xf32>
    %58 = vector.shape_cast %57 : vector<16xf32> to vector<1x1x1x16xf32>
    %59 = vector.broadcast %58 : vector<1x1x1x16xf32> to vector<2x8x8x16xf32>
    %60 = arith.mulf %55, %59 : vector<2x8x8x16xf32>
    %61 = arith.addf %54, %60 : vector<2x8x8x16xf32>
    %c0_38 = arith.constant 0 : index
    %c2_39 = arith.constant 2 : index
    %c1_40 = arith.constant 1 : index
    %c0_41 = arith.constant 0 : index
    %62 = vector.load %arg7[%c0_38, %c2_39, %c1_40, %c0_41] : memref<2x10x10x16xf32, #tpu.memory_space<vmem>>, vector<2x8x8x16xf32>
    %63 = vector.extract_strided_slice %4 {offsets = [7, 0], sizes = [1, 16], strides = [1, 1]} : vector<9x16xf32> to vector<1x16xf32>
    %64 = vector.shape_cast %63 : vector<1x16xf32> to vector<16xf32>
    %65 = vector.shape_cast %64 : vector<16xf32> to vector<1x1x1x16xf32>
    %66 = vector.broadcast %65 : vector<1x1x1x16xf32> to vector<2x8x8x16xf32>
    %67 = arith.mulf %62, %66 : vector<2x8x8x16xf32>
    %68 = arith.addf %61, %67 : vector<2x8x8x16xf32>
    %c0_42 = arith.constant 0 : index
    %c2_43 = arith.constant 2 : index
    %c2_44 = arith.constant 2 : index
    %c0_45 = arith.constant 0 : index
    %69 = vector.load %arg7[%c0_42, %c2_43, %c2_44, %c0_45] : memref<2x10x10x16xf32, #tpu.memory_space<vmem>>, vector<2x8x8x16xf32>
    %70 = vector.extract_strided_slice %4 {offsets = [8, 0], sizes = [1, 16], strides = [1, 1]} : vector<9x16xf32> to vector<1x16xf32>
    %71 = vector.shape_cast %70 : vector<1x16xf32> to vector<16xf32>
    %72 = vector.shape_cast %71 : vector<16xf32> to vector<1x1x1x16xf32>
    %73 = vector.broadcast %72 : vector<1x1x1x16xf32> to vector<2x8x8x16xf32>
    %74 = arith.mulf %69, %73 : vector<2x8x8x16xf32>
    %75 = arith.addf %68, %74 : vector<2x8x8x16xf32>
    %cst = arith.constant 5.000000e-01 : f32
    %76 = vector.broadcast %cst : f32 to vector<2x8x8x16xf32>
    %77 = arith.mulf %76, %75 : vector<2x8x8x16xf32>
    %cst_46 = arith.constant 0.707106769 : f32
    %78 = vector.broadcast %cst_46 : f32 to vector<2x8x8x16xf32>
    %79 = arith.mulf %75, %78 : vector<2x8x8x16xf32>
    %80 = math.erf %79 : vector<2x8x8x16xf32>
    %cst_47 = arith.constant 1.000000e+00 : f32
    %81 = vector.broadcast %cst_47 : f32 to vector<2x8x8x16xf32>
    %82 = arith.addf %81, %80 : vector<2x8x8x16xf32>
    %83 = arith.mulf %77, %82 : vector<2x8x8x16xf32>
    %cst_48 = arith.constant dense<0.000000e+00> : vector<16xf32>
    %84 = vector.multi_reduction <add>, %83, %cst_48 [0, 1, 2] : vector<2x8x8x16xf32> to vector<16xf32>
    %85 = vector.shape_cast %84 : vector<16xf32> to vector<1x1x1x16xf32>
    %86 = arith.mulf %83, %83 : vector<2x8x8x16xf32>
    %cst_49 = arith.constant dense<0.000000e+00> : vector<16xf32>
    %87 = vector.multi_reduction <add>, %86, %cst_49 [0, 1, 2] : vector<2x8x8x16xf32> to vector<16xf32>
    %88 = vector.shape_cast %87 : vector<16xf32> to vector<1x1x1x16xf32>
    %cst_50 = arith.constant 1.280000e+02 : f32
    %89 = vector.broadcast %cst_50 : f32 to vector<1x1x1x16xf32>
    %90 = arith.divf %85, %89 : vector<1x1x1x16xf32>
    %cst_51 = arith.constant 1.280000e+02 : f32
    %91 = vector.broadcast %cst_51 : f32 to vector<1x1x1x16xf32>
    %92 = arith.divf %88, %91 : vector<1x1x1x16xf32>
    %93 = arith.mulf %90, %90 : vector<1x1x1x16xf32>
    %94 = arith.subf %92, %93 : vector<1x1x1x16xf32>
    %95 = vector.broadcast %90 : vector<1x1x1x16xf32> to vector<2x8x8x16xf32>
    %96 = arith.subf %83, %95 : vector<2x8x8x16xf32>
    %cst_52 = arith.constant 9.99999974E-6 : f32
    %97 = vector.broadcast %cst_52 : f32 to vector<1x1x1x16xf32>
    %98 = arith.addf %94, %97 : vector<1x1x1x16xf32>
    %99 = math.rsqrt %98 : vector<1x1x1x16xf32>
    %100 = vector.broadcast %99 : vector<1x1x1x16xf32> to vector<2x8x8x16xf32>
    %101 = arith.mulf %96, %100 : vector<2x8x8x16xf32>
    %c0_53 = arith.constant 0 : index
    %c1_54 = arith.constant 1 : index
    %c1_55 = arith.constant 1 : index
    %c0_56 = arith.constant 0 : index
    %102 = vector.load %arg7[%c0_53, %c1_54, %c1_55, %c0_56] : memref<2x10x10x16xf32, #tpu.memory_space<vmem>>, vector<2x8x8x16xf32>
    %103 = arith.addf %101, %102 : vector<2x8x8x16xf32>
    %104 = vector.shape_cast %103 : vector<2x8x8x16xf32> to vector<128x16xf32>
    %105 = arith.truncf %104 : vector<128x16xf32> to vector<128x16xbf16>
    %106 = arith.truncf %8 : vector<16x16xf32> to vector<16x16xbf16>
    %cst_57 = arith.constant dense<0.000000e+00> : vector<128x16xf32>
    %107 = tpu.matmul %105, %106, %cst_57 {dimension_numbers = #tpu.dot_dimension_numbers<[1], [0], [0], [1], [0, 0, 1, 1], [], []>} : vector<128x16xbf16>, vector<16x16xbf16>, vector<128x16xf32> -> vector<128x16xf32>
    %108 = vector.broadcast %10 : vector<1x16xf32> to vector<128x16xf32>
    %109 = arith.addf %107, %108 : vector<128x16xf32>
    %cst_58 = arith.constant 5.000000e-01 : f32
    %110 = vector.broadcast %cst_58 : f32 to vector<128x16xf32>
    %111 = arith.mulf %110, %109 : vector<128x16xf32>
    %cst_59 = arith.constant 0.707106769 : f32
    %112 = vector.broadcast %cst_59 : f32 to vector<128x16xf32>
    %113 = arith.mulf %109, %112 : vector<128x16xf32>
    %114 = math.erf %113 : vector<128x16xf32>
    %cst_60 = arith.constant 1.000000e+00 : f32
    %115 = vector.broadcast %cst_60 : f32 to vector<128x16xf32>
    %116 = arith.addf %115, %114 : vector<128x16xf32>
    %117 = arith.mulf %111, %116 : vector<128x16xf32>
    %cst_61 = arith.constant dense<0.000000e+00> : vector<16xf32>
    %118 = vector.multi_reduction <add>, %117, %cst_61 [0] : vector<128x16xf32> to vector<16xf32>
    %119 = vector.shape_cast %118 : vector<16xf32> to vector<1x16xf32>
    %120 = arith.mulf %117, %117 : vector<128x16xf32>
    %cst_62 = arith.constant dense<0.000000e+00> : vector<16xf32>
    %121 = vector.multi_reduction <add>, %120, %cst_62 [0] : vector<128x16xf32> to vector<16xf32>
    %122 = vector.shape_cast %121 : vector<16xf32> to vector<1x16xf32>
    %cst_63 = arith.constant 1.280000e+02 : f32
    %123 = vector.broadcast %cst_63 : f32 to vector<1x16xf32>
    %124 = arith.divf %119, %123 : vector<1x16xf32>
    %cst_64 = arith.constant 1.280000e+02 : f32
    %125 = vector.broadcast %cst_64 : f32 to vector<1x16xf32>
    %126 = arith.divf %122, %125 : vector<1x16xf32>
    %127 = arith.mulf %124, %124 : vector<1x16xf32>
    %128 = arith.subf %126, %127 : vector<1x16xf32>
    %129 = vector.broadcast %124 : vector<1x16xf32> to vector<128x16xf32>
    %130 = arith.subf %117, %129 : vector<128x16xf32>
    %cst_65 = arith.constant 9.99999974E-6 : f32
    %131 = vector.broadcast %cst_65 : f32 to vector<1x16xf32>
    %132 = arith.addf %128, %131 : vector<1x16xf32>
    %133 = math.rsqrt %132 : vector<1x16xf32>
    %134 = vector.broadcast %133 : vector<1x16xf32> to vector<128x16xf32>
    %135 = arith.mulf %130, %134 : vector<128x16xf32>
    %136 = vector.shape_cast %135 : vector<128x16xf32> to vector<2x8x8x16xf32>
    %c0_66 = arith.constant 0 : index
    %c1_67 = arith.constant 1 : index
    %c1_68 = arith.constant 1 : index
    %c0_69 = arith.constant 0 : index
    %137 = vector.load %arg7[%c0_66, %c1_67, %c1_68, %c0_69] : memref<2x10x10x16xf32, #tpu.memory_space<vmem>>, vector<2x8x8x16xf32>
    tpu.vector_store %arg7[%c0_66, %c1_67, %c1_68, %c0_69], %136 {strides = array<i32>} : memref<2x10x10x16xf32, #tpu.memory_space<vmem>>, vector<2x8x8x16xf32>,
    %c1_i32 = arith.constant 1 : i32
    %138 = arith.cmpi eq, %arg0, %c1_i32 : i32
    %139 = arith.extui %138 : i1 to i32
    %c0_i32_70 = arith.constant 0 : i32
    %140 = arith.cmpi ne, %139, %c0_i32_70 : i32
    scf.if %140 {
      %c0_71 = arith.constant 0 : index
      %c0_72 = arith.constant 0 : index
      %c0_73 = arith.constant 0 : index
      %c0_74 = arith.constant 0 : index
      %141 = vector.load %arg6[%c0_71, %c0_72, %c0_73, %c0_74] : memref<2x8x8x16xf32, #tpu.memory_space<vmem>>, vector<2x8x8x16xf32>
      tpu.vector_store %arg6[%c0_71, %c0_72, %c0_73, %c0_74], %136 {strides = array<i32>} : memref<2x8x8x16xf32, #tpu.memory_space<vmem>>, vector<2x8x8x16xf32>,
    } else {
    }
    return
  }
  func.func @transform_0(%arg0: i32) -> (i32, i32, i32, i32) {
    %c0_i32 = arith.constant 0 : i32
    %c0_i32_0 = arith.constant 0 : i32
    %c0_i32_1 = arith.constant 0 : i32
    %c0_i32_2 = arith.constant 0 : i32
    %c0_i32_3 = arith.constant 0 : i32
    return %c0_i32, %c0_i32_0, %c0_i32_1, %c0_i32_2 : i32, i32, i32, i32
  }
  func.func @transform_1(%arg0: i32) -> (i32, i32, i32) {
    %c0_i32 = arith.constant 0 : i32
    %c0_i32_0 = arith.constant 0 : i32
    %c0_i32_1 = arith.constant 0 : i32
    return %arg0, %c0_i32, %c0_i32_0 : i32, i32, i32
  }
  func.func @transform_2(%arg0: i32) -> (i32, i32, i32) {
    %c0_i32 = arith.constant 0 : i32
    %c0_i32_0 = arith.constant 0 : i32
    %c0_i32_1 = arith.constant 0 : i32
    return %arg0, %c0_i32, %c0_i32_0 : i32, i32, i32
  }
  func.func @transform_3(%arg0: i32) -> (i32, i32, i32) {
    %c0_i32 = arith.constant 0 : i32
    %c0_i32_0 = arith.constant 0 : i32
    %c0_i32_1 = arith.constant 0 : i32
    return %arg0, %c0_i32, %c0_i32_0 : i32, i32, i32
  }
  func.func @transform_4(%arg0: i32) -> (i32, i32, i32) {
    %c0_i32 = arith.constant 0 : i32
    %c0_i32_0 = arith.constant 0 : i32
    %c0_i32_1 = arith.constant 0 : i32
    return %arg0, %c0_i32, %c0_i32_0 : i32, i32, i32
  }
  func.func @transform_5(%arg0: i32) -> (i32, i32, i32, i32) {
    %c0_i32 = arith.constant 0 : i32
    %c0_i32_0 = arith.constant 0 : i32
    %c0_i32_1 = arith.constant 0 : i32
    %c0_i32_2 = arith.constant 0 : i32
    %c0_i32_3 = arith.constant 0 : i32
    return %c0_i32, %c0_i32_0, %c0_i32_1, %c0_i32_2 : i32, i32, i32, i32
  }
}

</mosaic_0001>

<llo_original>
// kernel: conv_mixer_layer.1
$region0: #{conv_mixer_layer.1}
  #allocation0 [shape = 'u32[]', space=smem, size = 0x4, offset = 0x4, fixed_abs, tag = 'smem constant byte address 0x4 - core index']
  #allocation1 [shape = 'u32[144,128]{1,0:T(1,128)}', space=vmem, size = 0x12000, scoped, tag = 'internal scratch']
  #allocation2 [shape = 'f32[2,10,10,16]{3,2,1,0:T(8,128)}', space=vmem, size = 0x28000, scoped, tag = 'scratch operand']
  %s0 = inlined_call_operand.vmem [shape: f32[2,8,8,16], index: 0, kind: input, shape index: {}]
  %s1 = inlined_call_operand.vmem [shape: f32[2,9,16], index: 1, kind: input, shape index: {}]
  %s2 = inlined_call_operand.vmem [shape: f32[2,1,16], index: 2, kind: input, shape index: {}]
  %s3 = inlined_call_operand.vmem [shape: f32[2,16,16], index: 3, kind: input, shape index: {}]
  %s4 = inlined_call_operand.vmem [shape: f32[2,1,16], index: 4, kind: input, shape index: {}]
  %s5 = inlined_call_operand.hbm [shape: f32[2,8,8,16], index: 5, kind: output, shape index: {}]
  %s6 = sld [smem:[#allocation0]]
  $region61: #{conv_mixer_layer.1} parent=0
    _
  %s8 = ssub.s32 1, %s6
  %s9 = scalar_select 0, %s8, %s6
  $region1: #{conv_mixer_layer.1} parent=0
    #allocation3 [shape = 'u8[65536]{0}', space=vmem, size = 0x10000, scoped, tag = 'output window, operand 0, single buffered']
    #allocation4 [shape = 's32[2]{0}', space=sflag, size = 0x8, scoped, tag = 'scoped memory for conv_mixer_layer.1']
    %10 = vsyncpa [#allocation4], 0
    loop: start=0, step=1, limit=4
    $region2: #{conv_mixer_layer.1} parent=1 // loop_pre_header
      _
    $region3: #{conv_mixer_layer.1} parent=1 // loop_header
      %s12 = sphi 0, %s16
      %p13 = scmp.ge.s32.totalorder %s12, 4
      %s20 = sphi 0, %s20
      %s22 = sphi 0, %s20
      %s23 = sphi 0, %s22
      %s37 = sphi 0, %s23
      %s43 = sphi 0, %s45
      %s46 = sphi 0, %s43
      %s47 = sphi 0, %s46
      %s63 = sphi 0, %s47
      %s69 = sphi 0, %s71
      %s72 = sphi 0, %s69
      %s73 = sphi 0, %s72
      %s89 = sphi 0, %s73
      %s95 = sphi 0, %s97
      %s98 = sphi 0, %s95
      %s99 = sphi 0, %s98
      %s115 = sphi 0, %s99
      %s121 = sphi 0, %s123
      %s124 = sphi 0, %s121
      %s125 = sphi 0, %s124
      %s141 = sphi 0, %s125
      %s145 = sphi 0, %s145
      %s147 = sphi 0, %s145
      %s148 = sphi 0, %s147
      %s162 = sphi 0, %s148
    $region4: #{conv_mixer_layer.1} parent=1 // loop_header_branch
      %15 = sbr.rel (%p13) target = $region8
    $region5: #{conv_mixer_layer.1} parent=1 // loop_body
      %s17 = ssub.s32 %s12, 1
      %s18 = ssub.s32 %s12, 2
      %s19 = sadd.s32 %s12, 1
      %s21 = sadd.s32 %s20, 1
      %p24 = scmp.eq.s32.totalorder %s12, 1
      %p25 = scmp.ne.s32.totalorder %s20, %s22
      %p26 = scmp.eq.s32.totalorder %s12, 0
      %p27 = por %p25, %p26
      %p28 = scmp.ne.s32.totalorder %s20, %s22
      %p29 = scmp.eq.s32.totalorder %s17, 1
      %p30 = por %p28, %p29
      %p31 = scmp.ne.s32.totalorder %s22, %s23
      %p32 = scmp.eq.s32.totalorder %s17, 0
      %p33 = por %p31, %p32
      %p34 = scmp.ne.s32.totalorder %s22, %s23
      %p35 = scmp.eq.s32.totalorder %s18, 1
      %p36 = por %p34, %p35
      %p38 = scmp.ne.s32.totalorder %s23, %s37
      %p39 = scmp.eq.s32.totalorder %s18, 0
      %p40 = por %p38, %p39
      %s41 = ssub.s32 %s12, %s19
      %p42 = scmp.eq.s32.totalorder %s41, 0
      %s44 = sadd.s32 %s43, 1
      %s45 = scalar_select %p42, %s43, %s44
      %p48 = pneg %p42
      %p49 = scmp.eq.s32.totalorder %s12, 1
      %p50 = por %p48, %p49
      %p51 = scmp.ne.s32.totalorder %s43, %s46
      %p52 = scmp.eq.s32.totalorder %s12, 0
      %p53 = por %p51, %p52
      %p54 = scmp.ne.s32.totalorder %s43, %s46
      %p55 = scmp.eq.s32.totalorder %s17, 1
      %p56 = por %p54, %p55
      %p57 = scmp.ne.s32.totalorder %s46, %s47
      %p58 = scmp.eq.s32.totalorder %s17, 0
      %p59 = por %p57, %p58
      %p60 = scmp.ne.s32.totalorder %s46, %s47
      %p61 = scmp.eq.s32.totalorder %s18, 1
      %p62 = por %p60, %p61
      %p64 = scmp.ne.s32.totalorder %s47, %s63
      %p65 = scmp.eq.s32.totalorder %s18, 0
      %p66 = por %p64, %p65
      %s67 = ssub.s32 %s12, %s19
      %p68 = scmp.eq.s32.totalorder %s67, 0
      %s70 = sadd.s32 %s69, 1
      %s71 = scalar_select %p68, %s69, %s70
      %p74 = pneg %p68
      %p75 = scmp.eq.s32.totalorder %s12, 1
      %p76 = por %p74, %p75
      %p77 = scmp.ne.s32.totalorder %s69, %s72
      %p78 = scmp.eq.s32.totalorder %s12, 0
      %p79 = por %p77, %p78
      %p80 = scmp.ne.s32.totalorder %s69, %s72
      %p81 = scmp.eq.s32.totalorder %s17, 1
      %p82 = por %p80, %p81
      %p83 = scmp.ne.s32.totalorder %s72, %s73
      %p84 = scmp.eq.s32.totalorder %s17, 0
      %p85 = por %p83, %p84
      %p86 = scmp.ne.s32.totalorder %s72, %s73
      %p87 = scmp.eq.s32.totalorder %s18, 1
      %p88 = por %p86, %p87
      %p90 = scmp.ne.s32.totalorder %s73, %s89
      %p91 = scmp.eq.s32.totalorder %s18, 0
      %p92 = por %p90, %p91
      %s93 = ssub.s32 %s12, %s19
      %p94 = scmp.eq.s32.totalorder %s93, 0
      %s96 = sadd.s32 %s95, 1
      %s97 = scalar_select %p94, %s95, %s96
      %p100 = pneg %p94
      %p101 = scmp.eq.s32.totalorder %s12, 1
      %p102 = por %p100, %p101
      %p103 = scmp.ne.s32.totalorder %s95, %s98
      %p104 = scmp.eq.s32.totalorder %s12, 0
      %p105 = por %p103, %p104
      %p106 = scmp.ne.s32.totalorder %s95, %s98
      %p107 = scmp.eq.s32.totalorder %s17, 1
      %p108 = por %p106, %p107
      %p109 = scmp.ne.s32.totalorder %s98, %s99
      %p110 = scmp.eq.s32.totalorder %s17, 0
      %p111 = por %p109, %p110
      %p112 = scmp.ne.s32.totalorder %s98, %s99
      %p113 = scmp.eq.s32.totalorder %s18, 1
      %p114 = por %p112, %p113
      %p116 = scmp.ne.s32.totalorder %s99, %s115
      %p117 = scmp.eq.s32.totalorder %s18, 0
      %p118 = por %p116, %p117
      %s119 = ssub.s32 %s12, %s19
      %p120 = scmp.eq.s32.totalorder %s119, 0
      %s122 = sadd.s32 %s121, 1
      %s123 = scalar_select %p120, %s121, %s122
      %p126 = pneg %p120
      %p127 = scmp.eq.s32.totalorder %s12, 1
      %p128 = por %p126, %p127
      %p129 = scmp.ne.s32.totalorder %s121, %s124
      %p130 = scmp.eq.s32.totalorder %s12, 0
      %p131 = por %p129, %p130
      %p132 = scmp.ne.s32.totalorder %s121, %s124
      %p133 = scmp.eq.s32.totalorder %s17, 1
      %p134 = por %p132, %p133
      %p135 = scmp.ne.s32.totalorder %s124, %s125
      %p136 = scmp.eq.s32.totalorder %s17, 0
      %p137 = por %p135, %p136
      %p138 = scmp.ne.s32.totalorder %s124, %s125
      %p139 = scmp.eq.s32.totalorder %s18, 1
      %p140 = por %p138, %p139
      %p142 = scmp.ne.s32.totalorder %s125, %s141
      %p143 = scmp.eq.s32.totalorder %s18, 0
      %p144 = por %p142, %p143
      %s146 = sadd.s32 %s145, 1
      %p149 = scmp.eq.s32.totalorder %s12, 1
      %p150 = scmp.ne.s32.totalorder %s145, %s147
      %p151 = scmp.eq.s32.totalorder %s12, 0
      %p152 = por %p150, %p151
      %p153 = scmp.ne.s32.totalorder %s145, %s147
      %p154 = scmp.eq.s32.totalorder %s17, 1
      %p155 = por %p153, %p154
      %p156 = scmp.ne.s32.totalorder %s147, %s148
      %p157 = scmp.eq.s32.totalorder %s17, 0
      %p158 = por %p156, %p157
      %p159 = scmp.ne.s32.totalorder %s147, %s148
      %p160 = scmp.eq.s32.totalorder %s18, 1
      %p161 = por %p159, %p160
      %p163 = scmp.ne.s32.totalorder %s148, %s162
      %p164 = scmp.eq.s32.totalorder %s18, 0
      %p165 = por %p163, %p164
      %p166 = scmp.le.s32.totalorder 1, %s12
      %p167 = scmp.lt.s32.totalorder %s12, 3
      %p168 = pnand %p166, %p167
      %p169 = pneg %p168
      // Predicated region
      $region9: #{conv_mixer_layer.1} parent=5 // pred_check
        _
      $region10: #{conv_mixer_layer.1} parent=5 // pred_check_branch
        %171 = sbr.rel (%p168) target = $region12
      $region11: #{conv_mixer_layer.1} parent=5 // pred_region
        %s172 = ssub.s32 %s12, 1
        // Predicated region
        $region13: #{conv_mixer_layer.1} parent=11 // pred_check
          %p173 = pneg %p33
        $region14: #{conv_mixer_layer.1} parent=11 // pred_check_branch
          %175 = sbr.rel (%p173) target = $region16
        $region15: #{conv_mixer_layer.1} parent=11 // pred_region
          _
        $region16: #{conv_mixer_layer.1} parent=11 // pred_fallthru
          _
      $region12: #{conv_mixer_layer.1} parent=5 // pred_fallthru
        _
      %p176 = scmp.lt.s32.totalorder %s12, 2
      // Predicated region
      $region17: #{conv_mixer_layer.1} parent=5 // pred_check
        %p177 = pneg %p176
      $region18: #{conv_mixer_layer.1} parent=5 // pred_check_branch
        %179 = sbr.rel (%p177) target = $region20
      $region19: #{conv_mixer_layer.1} parent=5 // pred_region
        // Predicated region
        $region21: #{conv_mixer_layer.1} parent=19 // pred_check
          %p180 = pneg %p53
        $region22: #{conv_mixer_layer.1} parent=19 // pred_check_branch
          %182 = sbr.rel (%p180) target = $region24
        $region23: #{conv_mixer_layer.1} parent=19 // pred_region
          %p183 = scmp.lt.s32.totalorder %s12, 1
          %s184 = scalar_select %p183, %s12, 1
          %s185 = smul.addr %s184, 2
          %s186 = smul.addr %s185, 8
          %s187 = scalar_lea.vmem %s1, %s186
        $region24: #{conv_mixer_layer.1} parent=19 // pred_fallthru
          _
        // Predicated region
        $region25: #{conv_mixer_layer.1} parent=19 // pred_check
          %p188 = pneg %p79
        $region26: #{conv_mixer_layer.1} parent=19 // pred_check_branch
          %190 = sbr.rel (%p188) target = $region28
        $region27: #{conv_mixer_layer.1} parent=19 // pred_region
          %p191 = scmp.lt.s32.totalorder %s12, 1
          %s192 = scalar_select %p191, %s12, 1
          %s193 = scalar_lea.vmem %s2, %s192
        $region28: #{conv_mixer_layer.1} parent=19 // pred_fallthru
          _
        // Predicated region
        $region29: #{conv_mixer_layer.1} parent=19 // pred_check
          %p194 = pneg %p105
        $region30: #{conv_mixer_layer.1} parent=19 // pred_check_branch
          %196 = sbr.rel (%p194) target = $region32
        $region31: #{conv_mixer_layer.1} parent=19 // pred_region
          %p197 = scmp.lt.s32.totalorder %s12, 1
          %s198 = scalar_select %p197, %s12, 1
          %s199 = smul.addr %s198, 2
          %s200 = smul.addr %s199, 8
          %s201 = scalar_lea.vmem %s3, %s200
        $region32: #{conv_mixer_layer.1} parent=19 // pred_fallthru
          _
        // Predicated region
        $region33: #{conv_mixer_layer.1} parent=19 // pred_check
          %p202 = pneg %p131
        $region34: #{conv_mixer_layer.1} parent=19 // pred_check_branch
          %204 = sbr.rel (%p202) target = $region36
        $region35: #{conv_mixer_layer.1} parent=19 // pred_region
          %p205 = scmp.lt.s32.totalorder %s12, 1
          %s206 = scalar_select %p205, %s12, 1
          %s207 = scalar_lea.vmem %s4, %s206
        $region36: #{conv_mixer_layer.1} parent=19 // pred_fallthru
          _
      $region20: #{conv_mixer_layer.1} parent=5 // pred_fallthru
        _
      %p208 = scmp.le.s32.totalorder 1, %s12
      %p209 = scmp.lt.s32.totalorder %s12, 3
      %p210 = pnand %p208, %p209
      %p211 = pneg %p210
      // Predicated region
      $region37: #{conv_mixer_layer.1} parent=5 // pred_check
        _
      $region38: #{conv_mixer_layer.1} parent=5 // pred_check_branch
        %213 = sbr.rel (%p210) target = $region40
      $region39: #{conv_mixer_layer.1} parent=5 // pred_region
        %s214 = ssub.s32 %s12, 1
        %p215 = pneg %p33
        %p216 = pneg %p30
        %p217 = scmp.lt.s32.totalorder %s17, 1
        %s218 = scalar_select %p217, %s17, 1
        %s219 = smul.addr %s218, 2
        %s220 = smul.addr %s219, 8
        %s221 = scalar_lea.vmem %s1, %s220
        %p222 = pneg %p59
        %p223 = pneg %p56
        %p224 = scmp.lt.s32.totalorder %s17, 1
        %s225 = scalar_select %p224, %s17, 1
        %s226 = scalar_lea.vmem %s2, %s225
        %p227 = pneg %p85
        %p228 = pneg %p82
        %p229 = scmp.lt.s32.totalorder %s17, 1
        %s230 = scalar_select %p229, %s17, 1
        %s231 = smul.addr %s230, 2
        %s232 = smul.addr %s231, 8
        %s233 = scalar_lea.vmem %s3, %s232
        %p234 = pneg %p111
        %p235 = pneg %p108
        %p236 = scmp.lt.s32.totalorder %s17, 1
        %s237 = scalar_select %p236, %s17, 1
        %s238 = scalar_lea.vmem %s4, %s237
        %p239 = pneg %p137
        %p240 = pneg %p134
        %p241 = pneg %p158
        %p242 = pneg %p155
        %p243 = scmp.lt.s32.totalorder %s17, 1
        %s244 = scalar_select %p243, %s17, 1
        %s245 = smul.addr %s244, 2
        %s246 = smul.addr %s245, 8
        %s247 = scalar_lea.vmem %s1, %s246
        %p248 = scmp.lt.s32.totalorder %s17, 1
        %s249 = scalar_select %p248, %s17, 1
        %s250 = scalar_lea.vmem %s2, %s249
        %p251 = scmp.lt.s32.totalorder %s17, 1
        %s252 = scalar_select %p251, %s17, 1
        %s253 = smul.addr %s252, 2
        %s254 = smul.addr %s253, 8
        %s255 = scalar_lea.vmem %s3, %s254
        %p256 = scmp.lt.s32.totalorder %s17, 1
        %s257 = scalar_select %p256, %s17, 1
        %s258 = scalar_lea.vmem %s4, %s257
        %p260 = scmp.eq.s32.totalorder %s17, 0
        // Predicated region
        $region41: #{conv_mixer_layer.1} parent=39 // pred_check
          %p261 = pneg %p260
        $region42: #{conv_mixer_layer.1} parent=39 // pred_check_branch
          %263 = sbr.rel (%p261) target = $region44
        $region43: #{conv_mixer_layer.1} parent=39 // pred_region
          %vm264 = vcmask 130048
          %265 = vst.msk [vmem:[#allocation2] sm:$0xff] %vm264, 0.0
          %vm266 = vcmask 123904
          %267 = vst.msk [vmem:[#allocation2 + $0x8] sm:$0x3] %vm266, 0.0
          %268 = vst.msk [vmem:[#allocation2 + $0x10] sm:$0xff] %vm264, 0.0
          %269 = vst.msk [vmem:[#allocation2 + $0x18] sm:$0x3] %vm266, 0.0
          %270 = vst.msk [vmem:[#allocation2 + $0x20] sm:$0xff] %vm264, 0.0
          %271 = vst.msk [vmem:[#allocation2 + $0x28] sm:$0x3] %vm266, 0.0
          %272 = vst.msk [vmem:[#allocation2 + $0x30] sm:$0xff] %vm264, 0.0
          %273 = vst.msk [vmem:[#allocation2 + $0x38] sm:$0x3] %vm266, 0.0
          %274 = vst.msk [vmem:[#allocation2 + $0x40] sm:$0xff] %vm264, 0.0
          %275 = vst.msk [vmem:[#allocation2 + $0x48] sm:$0x3] %vm266, 0.0
          %276 = vst.msk [vmem:[#allocation2 + $0x50] sm:$0xff] %vm264, 0.0
          %277 = vst.msk [vmem:[#allocation2 + $0x58] sm:$0x3] %vm266, 0.0
          %278 = vst.msk [vmem:[#allocation2 + $0x60] sm:$0xff] %vm264, 0.0
          %279 = vst.msk [vmem:[#allocation2 + $0x68] sm:$0x3] %vm266, 0.0
          %280 = vst.msk [vmem:[#allocation2 + $0x70] sm:$0xff] %vm264, 0.0
          %281 = vst.msk [vmem:[#allocation2 + $0x78] sm:$0x3] %vm266, 0.0
          %282 = vst.msk [vmem:[#allocation2 + $0x80] sm:$0xff] %vm264, 0.0
          %283 = vst.msk [vmem:[#allocation2 + $0x88] sm:$0x3] %vm266, 0.0
          %284 = vst.msk [vmem:[#allocation2 + $0x90] sm:$0xff] %vm264, 0.0
          %285 = vst.msk [vmem:[#allocation2 + $0x98] sm:$0x3] %vm266, 0.0
          %286 = vst.msk [vmem:[#allocation2 + $0xa0] sm:$0xff] %vm264, 0.0
          %287 = vst.msk [vmem:[#allocation2 + $0xa8] sm:$0x3] %vm266, 0.0
          %288 = vst.msk [vmem:[#allocation2 + $0xb0] sm:$0xff] %vm264, 0.0
          %289 = vst.msk [vmem:[#allocation2 + $0xb8] sm:$0x3] %vm266, 0.0
          %290 = vst.msk [vmem:[#allocation2 + $0xc0] sm:$0xff] %vm264, 0.0
          %291 = vst.msk [vmem:[#allocation2 + $0xc8] sm:$0x3] %vm266, 0.0
          %292 = vst.msk [vmem:[#allocation2 + $0xd0] sm:$0xff] %vm264, 0.0
          %293 = vst.msk [vmem:[#allocation2 + $0xd8] sm:$0x3] %vm266, 0.0
          %294 = vst.msk [vmem:[#allocation2 + $0xe0] sm:$0xff] %vm264, 0.0
          %295 = vst.msk [vmem:[#allocation2 + $0xe8] sm:$0x3] %vm266, 0.0
          %296 = vst.msk [vmem:[#allocation2 + $0xf0] sm:$0xff] %vm264, 0.0
          %297 = vst.msk [vmem:[#allocation2 + $0xf8] sm:$0x3] %vm266, 0.0
          %298 = vst.msk [vmem:[#allocation2 + $0x100] sm:$0xff] %vm264, 0.0
          %299 = vst.msk [vmem:[#allocation2 + $0x108] sm:$0x3] %vm266, 0.0
          %300 = vst.msk [vmem:[#allocation2 + $0x110] sm:$0xff] %vm264, 0.0
          %301 = vst.msk [vmem:[#allocation2 + $0x118] sm:$0x3] %vm266, 0.0
          %302 = vst.msk [vmem:[#allocation2 + $0x120] sm:$0xff] %vm264, 0.0
          %303 = vst.msk [vmem:[#allocation2 + $0x128] sm:$0x3] %vm266, 0.0
          %304 = vst.msk [vmem:[#allocation2 + $0x130] sm:$0xff] %vm264, 0.0
          %305 = vst.msk [vmem:[#allocation2 + $0x138] sm:$0x3] %vm266, 0.0
          %v306 = vld [vmem:[%s0] sm:$0xff]
          %v307 = vld [vmem:[%s0 + $0x8] sm:$0xff]
          %v308 = vld [vmem:[%s0 + $0x10] sm:$0xff]
          %v309 = vld [vmem:[%s0 + $0x18] sm:$0xff]
          %v310 = vld [vmem:[%s0 + $0x20] sm:$0xff]
          %v311 = vld [vmem:[%s0 + $0x28] sm:$0xff]
          %v312 = vld [vmem:[%s0 + $0x30] sm:$0xff]
          %v313 = vld [vmem:[%s0 + $0x38] sm:$0xff]
          %v314 = vld [vmem:[%s0 + $0x40] sm:$0xff]
          %v315 = vld [vmem:[%s0 + $0x48] sm:$0xff]
          %v316 = vld [vmem:[%s0 + $0x50] sm:$0xff]
          %v317 = vld [vmem:[%s0 + $0x58] sm:$0xff]
          %v318 = vld [vmem:[%s0 + $0x60] sm:$0xff]
          %v319 = vld [vmem:[%s0 + $0x68] sm:$0xff]
          %v320 = vld [vmem:[%s0 + $0x70] sm:$0xff]
          %v321 = vld [vmem:[%s0 + $0x78] sm:$0xff]
          %s322 = scalar_lea.vmem [#allocation2], 16
          %323 = vst.msk [vmem:[%s322 + $0x1] sm:$0xff] %vm264, %v306
          %324 = vst.msk [vmem:[%s322 + $0x11] sm:$0xff] %vm264, %v307
          %325 = vst.msk [vmem:[%s322 + $0x21] sm:$0xff] %vm264, %v308
          %326 = vst.msk [vmem:[%s322 + $0x31] sm:$0xff] %vm264, %v309
          %327 = vst.msk [vmem:[%s322 + $0x41] sm:$0xff] %vm264, %v310
          %328 = vst.msk [vmem:[%s322 + $0x51] sm:$0xff] %vm264, %v311
          %329 = vst.msk [vmem:[%s322 + $0x61] sm:$0xff] %vm264, %v312
          %330 = vst.msk [vmem:[%s322 + $0x71] sm:$0xff] %vm264, %v313
          %331 = vst.msk [vmem:[%s322 + $0xa1] sm:$0xff] %vm264, %v314
          %332 = vst.msk [vmem:[%s322 + $0xb1] sm:$0xff] %vm264, %v315
          %333 = vst.msk [vmem:[%s322 + $0xc1] sm:$0xff] %vm264, %v316
          %334 = vst.msk [vmem:[%s322 + $0xd1] sm:$0xff] %vm264, %v317
          %335 = vst.msk [vmem:[%s322 + $0xe1] sm:$0xff] %vm264, %v318
          %336 = vst.msk [vmem:[%s322 + $0xf1] sm:$0xff] %vm264, %v319
          %337 = vst.msk [vmem:[%s322 + $0x101] sm:$0xff] %vm264, %v320
          %338 = vst.msk [vmem:[%s322 + $0x111] sm:$0xff] %vm264, %v321
        $region44: #{conv_mixer_layer.1} parent=39 // pred_fallthru
          _
        %v339 = vld [vmem:[%s247] sm:$0xff]
        %v340 = vld [vmem:[%s247 + $0x8] sm:$0x1]
        %v341 = vld [vmem:[%s250] sm:$0x1]
        %v342 = vld [vmem:[%s255] sm:$0xff]
        %v343 = vld [vmem:[%s255 + $0x8] sm:$0xff]
        %v344 = vld [vmem:[%s258] sm:$0x1]
        %v345 = vld [vmem:[#allocation2] sm:$0xff]
        %v346 = vld [vmem:[#allocation2 + $0x10] sm:$0xff]
        %v347 = vld [vmem:[#allocation2 + $0x20] sm:$0xff]
        %v348 = vld [vmem:[#allocation2 + $0x30] sm:$0xff]
        %v349 = vld [vmem:[#allocation2 + $0x40] sm:$0xff]
        %v350 = vld [vmem:[#allocation2 + $0x50] sm:$0xff]
        %v351 = vld [vmem:[#allocation2 + $0x60] sm:$0xff]
        %v352 = vld [vmem:[#allocation2 + $0x70] sm:$0xff]
        %v353 = vld [vmem:[#allocation2 + $0xa0] sm:$0xff]
        %v354 = vld [vmem:[#allocation2 + $0xb0] sm:$0xff]
        %v355 = vld [vmem:[#allocation2 + $0xc0] sm:$0xff]
        %v356 = vld [vmem:[#allocation2 + $0xd0] sm:$0xff]
        %v357 = vld [vmem:[#allocation2 + $0xe0] sm:$0xff]
        %v358 = vld [vmem:[#allocation2 + $0xf0] sm:$0xff]
        %v359 = vld [vmem:[#allocation2 + $0x100] sm:$0xff]
        %v360 = vld [vmem:[#allocation2 + $0x110] sm:$0xff]
        %v361 = vlaneseq
        %v362 = vshrl.u32 %v361, 7
        %v363 = vsub.s32 0, %v362
        %v364 = vrot.slane %v339, %v363
        %v365 = vmul.f32 %v345, %v364
        %v366 = vmul.f32 %v346, %v364
        %v367 = vmul.f32 %v347, %v364
        %v368 = vmul.f32 %v348, %v364
        %v369 = vmul.f32 %v349, %v364
        %v370 = vmul.f32 %v350, %v364
        %v371 = vmul.f32 %v351, %v364
        %v372 = vmul.f32 %v352, %v364
        %v373 = vmul.f32 %v353, %v364
        %v374 = vmul.f32 %v354, %v364
        %v375 = vmul.f32 %v355, %v364
        %v376 = vmul.f32 %v356, %v364
        %v377 = vmul.f32 %v357, %v364
        %v378 = vmul.f32 %v358, %v364
        %v379 = vmul.f32 %v359, %v364
        %v380 = vmul.f32 %v360, %v364
        %v382 = vlaneseq
        %v383 = vshrl.u32 %v382, 7
        %v384 = vsub.s32 0, %v383
        %v385 = vrot.slane %v341, %v384
        %v387 = vadd.f32 %v365, %v385
        %v388 = vadd.f32 %v366, %v385
        %v389 = vadd.f32 %v367, %v385
        %v390 = vadd.f32 %v368, %v385
        %v391 = vadd.f32 %v369, %v385
        %v392 = vadd.f32 %v370, %v385
        %v393 = vadd.f32 %v371, %v385
        %v394 = vadd.f32 %v372, %v385
        %v395 = vadd.f32 %v373, %v385
        %v396 = vadd.f32 %v374, %v385
        %v397 = vadd.f32 %v375, %v385
        %v398 = vadd.f32 %v376, %v385
        %v399 = vadd.f32 %v377, %v385
        %v400 = vadd.f32 %v378, %v385
        %v401 = vadd.f32 %v379, %v385
        %v402 = vadd.f32 %v380, %v385
        %v403 = vld [vmem:[#allocation2 + $0x1] sm:$0xff]
        %v404 = vld [vmem:[#allocation2 + $0x11] sm:$0xff]
        %v405 = vld [vmem:[#allocation2 + $0x21] sm:$0xff]
        %v406 = vld [vmem:[#allocation2 + $0x31] sm:$0xff]
        %v407 = vld [vmem:[#allocation2 + $0x41] sm:$0xff]
        %v408 = vld [vmem:[#allocation2 + $0x51] sm:$0xff]
        %v409 = vld [vmem:[#allocation2 + $0x61] sm:$0xff]
        %v410 = vld [vmem:[#allocation2 + $0x71] sm:$0xff]
        %v411 = vld [vmem:[#allocation2 + $0xa1] sm:$0xff]
        %v412 = vld [vmem:[#allocation2 + $0xb1] sm:$0xff]
        %v413 = vld [vmem:[#allocation2 + $0xc1] sm:$0xff]
        %v414 = vld [vmem:[#allocation2 + $0xd1] sm:$0xff]
        %v415 = vld [vmem:[#allocation2 + $0xe1] sm:$0xff]
        %v416 = vld [vmem:[#allocation2 + $0xf1] sm:$0xff]
        %v417 = vld [vmem:[#allocation2 + $0x101] sm:$0xff]
        %v418 = vld [vmem:[#allocation2 + $0x111] sm:$0xff]
        %v419 = vlaneseq
        %v420 = vshrl.u32 %v419, 7
        %v421 = vsub.s32 1, %v420
        %v422 = vrot.slane %v339, %v421
        %v423 = vmul.f32 %v403, %v422
        %v424 = vmul.f32 %v404, %v422
        %v425 = vmul.f32 %v405, %v422
        %v426 = vmul.f32 %v406, %v422
        %v427 = vmul.f32 %v407, %v422
        %v428 = vmul.f32 %v408, %v422
        %v429 = vmul.f32 %v409, %v422
        %v430 = vmul.f32 %v410, %v422
        %v431 = vmul.f32 %v411, %v422
        %v432 = vmul.f32 %v412, %v422
        %v433 = vmul.f32 %v413, %v422
        %v434 = vmul.f32 %v414, %v422
        %v435 = vmul.f32 %v415, %v422
        %v436 = vmul.f32 %v416, %v422
        %v437 = vmul.f32 %v417, %v422
        %v438 = vmul.f32 %v418, %v422
        %v439 = vadd.f32 %v387, %v423
        %v440 = vadd.f32 %v388, %v424
        %v441 = vadd.f32 %v389, %v425
        %v442 = vadd.f32 %v390, %v426
        %v443 = vadd.f32 %v391, %v427
        %v444 = vadd.f32 %v392, %v428
        %v445 = vadd.f32 %v393, %v429
        %v446 = vadd.f32 %v394, %v430
        %v447 = vadd.f32 %v395, %v431
        %v448 = vadd.f32 %v396, %v432
        %v449 = vadd.f32 %v397, %v433
        %v450 = vadd.f32 %v398, %v434
        %v451 = vadd.f32 %v399, %v435
        %v452 = vadd.f32 %v400, %v436
        %v453 = vadd.f32 %v401, %v437
        %v454 = vadd.f32 %v402, %v438
        %v455 = vld [vmem:[#allocation2 + $0x2] sm:$0xff]
        %v456 = vld [vmem:[#allocation2 + $0x12] sm:$0xff]
        %v457 = vld [vmem:[#allocation2 + $0x22] sm:$0xff]
        %v458 = vld [vmem:[#allocation2 + $0x32] sm:$0xff]
        %v459 = vld [vmem:[#allocation2 + $0x42] sm:$0xff]
        %v460 = vld [vmem:[#allocation2 + $0x52] sm:$0xff]
        %v461 = vld [vmem:[#allocation2 + $0x62] sm:$0xff]
        %v462 = vld [vmem:[#allocation2 + $0x72] sm:$0xff]
        %v463 = vld [vmem:[#allocation2 + $0xa2] sm:$0xff]
        %v464 = vld [vmem:[#allocation2 + $0xb2] sm:$0xff]
        %v465 = vld [vmem:[#allocation2 + $0xc2] sm:$0xff]
        %v466 = vld [vmem:[#allocation2 + $0xd2] sm:$0xff]
        %v467 = vld [vmem:[#allocation2 + $0xe2] sm:$0xff]
        %v468 = vld [vmem:[#allocation2 + $0xf2] sm:$0xff]
        %v469 = vld [vmem:[#allocation2 + $0x102] sm:$0xff]
        %v470 = vld [vmem:[#allocation2 + $0x112] sm:$0xff]
        %v471 = vlaneseq
        %v472 = vshrl.u32 %v471, 7
        %v473 = vsub.s32 2, %v472
        %v474 = vrot.slane %v339, %v473
        %v475 = vmul.f32 %v455, %v474
        %v476 = vmul.f32 %v456, %v474
        %v477 = vmul.f32 %v457, %v474
        %v478 = vmul.f32 %v458, %v474
        %v479 = vmul.f32 %v459, %v474
        %v480 = vmul.f32 %v460, %v474
        %v481 = vmul.f32 %v461, %v474
        %v482 = vmul.f32 %v462, %v474
        %v483 = vmul.f32 %v463, %v474
        %v484 = vmul.f32 %v464, %v474
        %v485 = vmul.f32 %v465, %v474
        %v486 = vmul.f32 %v466, %v474
        %v487 = vmul.f32 %v467, %v474
        %v488 = vmul.f32 %v468, %v474
        %v489 = vmul.f32 %v469, %v474
        %v490 = vmul.f32 %v470, %v474
        %v491 = vadd.f32 %v439, %v475
        %v492 = vadd.f32 %v440, %v476
        %v493 = vadd.f32 %v441, %v477
        %v494 = vadd.f32 %v442, %v478
        %v495 = vadd.f32 %v443, %v479
        %v496 = vadd.f32 %v444, %v480
        %v497 = vadd.f32 %v445, %v481
        %v498 = vadd.f32 %v446, %v482
        %v499 = vadd.f32 %v447, %v483
        %v500 = vadd.f32 %v448, %v484
        %v501 = vadd.f32 %v449, %v485
        %v502 = vadd.f32 %v450, %v486
        %v503 = vadd.f32 %v451, %v487
        %v504 = vadd.f32 %v452, %v488
        %v505 = vadd.f32 %v453, %v489
        %v506 = vadd.f32 %v454, %v490
        %s507 = scalar_lea.vmem [#allocation2], 16
        %v508 = vld [vmem:[%s507] sm:$0xff]
        %v509 = vld [vmem:[%s507 + $0x10] sm:$0xff]
        %v510 = vld [vmem:[%s507 + $0x20] sm:$0xff]
        %v511 = vld [vmem:[%s507 + $0x30] sm:$0xff]
        %v512 = vld [vmem:[%s507 + $0x40] sm:$0xff]
        %v513 = vld [vmem:[%s507 + $0x50] sm:$0xff]
        %v514 = vld [vmem:[%s507 + $0x60] sm:$0xff]
        %v515 = vld [vmem:[%s507 + $0x70] sm:$0xff]
        %v516 = vld [vmem:[%s507 + $0xa0] sm:$0xff]
        %v517 = vld [vmem:[%s507 + $0xb0] sm:$0xff]
        %v518 = vld [vmem:[%s507 + $0xc0] sm:$0xff]
        %v519 = vld [vmem:[%s507 + $0xd0] sm:$0xff]
        %v520 = vld [vmem:[%s507 + $0xe0] sm:$0xff]
        %v521 = vld [vmem:[%s507 + $0xf0] sm:$0xff]
        %v522 = vld [vmem:[%s507 + $0x100] sm:$0xff]
        %v523 = vld [vmem:[%s507 + $0x110] sm:$0xff]
        %v524 = vlaneseq
        %v525 = vshrl.u32 %v524, 7
        %v526 = vsub.s32 3, %v525
        %v527 = vrot.slane %v339, %v526
        %v528 = vmul.f32 %v508, %v527
        %v529 = vmul.f32 %v509, %v527
        %v530 = vmul.f32 %v510, %v527
        %v531 = vmul.f32 %v511, %v527
        %v532 = vmul.f32 %v512, %v527
        %v533 = vmul.f32 %v513, %v527
        %v534 = vmul.f32 %v514, %v527
        %v535 = vmul.f32 %v515, %v527
        %v536 = vmul.f32 %v516, %v527
        %v537 = vmul.f32 %v517, %v527
        %v538 = vmul.f32 %v518, %v527
        %v539 = vmul.f32 %v519, %v527
        %v540 = vmul.f32 %v520, %v527
        %v541 = vmul.f32 %v521, %v527
        %v542 = vmul.f32 %v522, %v527
        %v543 = vmul.f32 %v523, %v527
        %v544 = vadd.f32 %v491, %v528
        %v545 = vadd.f32 %v492, %v529
        %v546 = vadd.f32 %v493, %v530
        %v547 = vadd.f32 %v494, %v531
        %v548 = vadd.f32 %v495, %v532
        %v549 = vadd.f32 %v496, %v533
        %v550 = vadd.f32 %v497, %v534
        %v551 = vadd.f32 %v498, %v535
        %v552 = vadd.f32 %v499, %v536
        %v553 = vadd.f32 %v500, %v537
        %v554 = vadd.f32 %v501, %v538
        %v555 = vadd.f32 %v502, %v539
        %v556 = vadd.f32 %v503, %v540
        %v557 = vadd.f32 %v504, %v541
        %v558 = vadd.f32 %v505, %v542
        %v559 = vadd.f32 %v506, %v543
        %v560 = vld [vmem:[%s507 + $0x1] sm:$0xff]
        %v561 = vld [vmem:[%s507 + $0x11] sm:$0xff]
        %v562 = vld [vmem:[%s507 + $0x21] sm:$0xff]
        %v563 = vld [vmem:[%s507 + $0x31] sm:$0xff]
        %v564 = vld [vmem:[%s507 + $0x41] sm:$0xff]
        %v565 = vld [vmem:[%s507 + $0x51] sm:$0xff]
        %v566 = vld [vmem:[%s507 + $0x61] sm:$0xff]
        %v567 = vld [vmem:[%s507 + $0x71] sm:$0xff]
        %v568 = vld [vmem:[%s507 + $0xa1] sm:$0xff]
        %v569 = vld [vmem:[%s507 + $0xb1] sm:$0xff]
        %v570 = vld [vmem:[%s507 + $0xc1] sm:$0xff]
        %v571 = vld [vmem:[%s507 + $0xd1] sm:$0xff]
        %v572 = vld [vmem:[%s507 + $0xe1] sm:$0xff]
        %v573 = vld [vmem:[%s507 + $0xf1] sm:$0xff]
        %v574 = vld [vmem:[%s507 + $0x101] sm:$0xff]
        %v575 = vld [vmem:[%s507 + $0x111] sm:$0xff]
        %v576 = vlaneseq
        %v577 = vshrl.u32 %v576, 7
        %v578 = vsub.s32 4, %v577
        %v579 = vrot.slane %v339, %v578
        %v580 = vmul.f32 %v560, %v579
        %v581 = vmul.f32 %v561, %v579
        %v582 = vmul.f32 %v562, %v579
        %v583 = vmul.f32 %v563, %v579
        %v584 = vmul.f32 %v564, %v579
        %v585 = vmul.f32 %v565, %v579
        %v586 = vmul.f32 %v566, %v579
        %v587 = vmul.f32 %v567, %v579
        %v588 = vmul.f32 %v568, %v579
        %v589 = vmul.f32 %v569, %v579
        %v590 = vmul.f32 %v570, %v579
        %v591 = vmul.f32 %v571, %v579
        %v592 = vmul.f32 %v572, %v579
        %v593 = vmul.f32 %v573, %v579
        %v594 = vmul.f32 %v574, %v579
        %v595 = vmul.f32 %v575, %v579
        %v596 = vadd.f32 %v544, %v580
        %v597 = vadd.f32 %v545, %v581
        %v598 = vadd.f32 %v546, %v582
        %v599 = vadd.f32 %v547, %v583
        %v600 = vadd.f32 %v548, %v584
        %v601 = vadd.f32 %v549, %v585
        %v602 = vadd.f32 %v550, %v586
        %v603 = vadd.f32 %v551, %v587
        %v604 = vadd.f32 %v552, %v588
        %v605 = vadd.f32 %v553, %v589
        %v606 = vadd.f32 %v554, %v590
        %v607 = vadd.f32 %v555, %v591
        %v608 = vadd.f32 %v556, %v592
        %v609 = vadd.f32 %v557, %v593
        %v610 = vadd.f32 %v558, %v594
        %v611 = vadd.f32 %v559, %v595
        %v612 = vld [vmem:[%s507 + $0x2] sm:$0xff]
        %v613 = vld [vmem:[%s507 + $0x12] sm:$0xff]
        %v614 = vld [vmem:[%s507 + $0x22] sm:$0xff]
        %v615 = vld [vmem:[%s507 + $0x32] sm:$0xff]
        %v616 = vld [vmem:[%s507 + $0x42] sm:$0xff]
        %v617 = vld [vmem:[%s507 + $0x52] sm:$0xff]
        %v618 = vld [vmem:[%s507 + $0x62] sm:$0xff]
        %v619 = vld [vmem:[%s507 + $0x72] sm:$0xff]
        %v620 = vld [vmem:[%s507 + $0xa2] sm:$0xff]
        %v621 = vld [vmem:[%s507 + $0xb2] sm:$0xff]
        %v622 = vld [vmem:[%s507 + $0xc2] sm:$0xff]
        %v623 = vld [vmem:[%s507 + $0xd2] sm:$0xff]
        %v624 = vld [vmem:[%s507 + $0xe2] sm:$0xff]
        %v625 = vld [vmem:[%s507 + $0xf2] sm:$0xff]
        %v626 = vld [vmem:[%s507 + $0x102] sm:$0xff]
        %v627 = vld [vmem:[%s507 + $0x112] sm:$0xff]
        %v628 = vlaneseq
        %v629 = vshrl.u32 %v628, 7
        %v630 = vsub.s32 5, %v629
        %v631 = vrot.slane %v339, %v630
        %v632 = vmul.f32 %v612, %v631
        %v633 = vmul.f32 %v613, %v631
        %v634 = vmul.f32 %v614, %v631
        %v635 = vmul.f32 %v615, %v631
        %v636 = vmul.f32 %v616, %v631
        %v637 = vmul.f32 %v617, %v631
        %v638 = vmul.f32 %v618, %v631
        %v639 = vmul.f32 %v619, %v631
        %v640 = vmul.f32 %v620, %v631
        %v641 = vmul.f32 %v621, %v631
        %v642 = vmul.f32 %v622, %v631
        %v643 = vmul.f32 %v623, %v631
        %v644 = vmul.f32 %v624, %v631
        %v645 = vmul.f32 %v625, %v631
        %v646 = vmul.f32 %v626, %v631
        %v647 = vmul.f32 %v627, %v631
        %v648 = vadd.f32 %v596, %v632
        %v649 = vadd.f32 %v597, %v633
        %v650 = vadd.f32 %v598, %v634
        %v651 = vadd.f32 %v599, %v635
        %v652 = vadd.f32 %v600, %v636
        %v653 = vadd.f32 %v601, %v637
        %v654 = vadd.f32 %v602, %v638
        %v655 = vadd.f32 %v603, %v639
        %v656 = vadd.f32 %v604, %v640
        %v657 = vadd.f32 %v605, %v641
        %v658 = vadd.f32 %v606, %v642
        %v659 = vadd.f32 %v607, %v643
        %v660 = vadd.f32 %v608, %v644
        %v661 = vadd.f32 %v609, %v645
        %v662 = vadd.f32 %v610, %v646
        %v663 = vadd.f32 %v611, %v647
        %s664 = scalar_lea.vmem [#allocation2], 32
        %v665 = vld [vmem:[%s664] sm:$0xff]
        %v666 = vld [vmem:[%s664 + $0x10] sm:$0xff]
        %v667 = vld [vmem:[%s664 + $0x20] sm:$0xff]
        %v668 = vld [vmem:[%s664 + $0x30] sm:$0xff]
        %v669 = vld [vmem:[%s664 + $0x40] sm:$0xff]
        %v670 = vld [vmem:[%s664 + $0x50] sm:$0xff]
        %v671 = vld [vmem:[%s664 + $0x60] sm:$0xff]
        %v672 = vld [vmem:[%s664 + $0x70] sm:$0xff]
        %v673 = vld [vmem:[%s664 + $0xa0] sm:$0xff]
        %v674 = vld [vmem:[%s664 + $0xb0] sm:$0xff]
        %v675 = vld [vmem:[%s664 + $0xc0] sm:$0xff]
        %v676 = vld [vmem:[%s664 + $0xd0] sm:$0xff]
        %v677 = vld [vmem:[%s664 + $0xe0] sm:$0xff]
        %v678 = vld [vmem:[%s664 + $0xf0] sm:$0xff]
        %v679 = vld [vmem:[%s664 + $0x100] sm:$0xff]
        %v680 = vld [vmem:[%s664 + $0x110] sm:$0xff]
        %v681 = vlaneseq
        %v682 = vshrl.u32 %v681, 7
        %v683 = vsub.s32 6, %v682
        %v684 = vrot.slane %v339, %v683
        %v685 = vmul.f32 %v665, %v684
        %v686 = vmul.f32 %v666, %v684
        %v687 = vmul.f32 %v667, %v684
        %v688 = vmul.f32 %v668, %v684
        %v689 = vmul.f32 %v669, %v684
        %v690 = vmul.f32 %v670, %v684
        %v691 = vmul.f32 %v671, %v684
        %v692 = vmul.f32 %v672, %v684
        %v693 = vmul.f32 %v673, %v684
        %v694 = vmul.f32 %v674, %v684
        %v695 = vmul.f32 %v675, %v684
        %v696 = vmul.f32 %v676, %v684
        %v697 = vmul.f32 %v677, %v684
        %v698 = vmul.f32 %v678, %v684
        %v699 = vmul.f32 %v679, %v684
        %v700 = vmul.f32 %v680, %v684
        %v701 = vadd.f32 %v648, %v685
        %v702 = vadd.f32 %v649, %v686
        %v703 = vadd.f32 %v650, %v687
        %v704 = vadd.f32 %v651, %v688
        %v705 = vadd.f32 %v652, %v689
        %v706 = vadd.f32 %v653, %v690
        %v707 = vadd.f32 %v654, %v691
        %v708 = vadd.f32 %v655, %v692
        %v709 = vadd.f32 %v656, %v693
        %v710 = vadd.f32 %v657, %v694
        %v711 = vadd.f32 %v658, %v695
        %v712 = vadd.f32 %v659, %v696
        %v713 = vadd.f32 %v660, %v697
        %v714 = vadd.f32 %v661, %v698
        %v715 = vadd.f32 %v662, %v699
        %v716 = vadd.f32 %v663, %v700
        %v717 = vld [vmem:[%s664 + $0x1] sm:$0xff]
        %v718 = vld [vmem:[%s664 + $0x11] sm:$0xff]
        %v719 = vld [vmem:[%s664 + $0x21] sm:$0xff]
        %v720 = vld [vmem:[%s664 + $0x31] sm:$0xff]
        %v721 = vld [vmem:[%s664 + $0x41] sm:$0xff]
        %v722 = vld [vmem:[%s664 + $0x51] sm:$0xff]
        %v723 = vld [vmem:[%s664 + $0x61] sm:$0xff]
        %v724 = vld [vmem:[%s664 + $0x71] sm:$0xff]
        %v725 = vld [vmem:[%s664 + $0xa1] sm:$0xff]
        %v726 = vld [vmem:[%s664 + $0xb1] sm:$0xff]
        %v727 = vld [vmem:[%s664 + $0xc1] sm:$0xff]
        %v728 = vld [vmem:[%s664 + $0xd1] sm:$0xff]
        %v729 = vld [vmem:[%s664 + $0xe1] sm:$0xff]
        %v730 = vld [vmem:[%s664 + $0xf1] sm:$0xff]
        %v731 = vld [vmem:[%s664 + $0x101] sm:$0xff]
        %v732 = vld [vmem:[%s664 + $0x111] sm:$0xff]
        %v733 = vlaneseq
        %v734 = vshrl.u32 %v733, 7
        %v735 = vsub.s32 7, %v734
        %v736 = vrot.slane %v339, %v735
        %v737 = vmul.f32 %v717, %v736
        %v738 = vmul.f32 %v718, %v736
        %v739 = vmul.f32 %v719, %v736
        %v740 = vmul.f32 %v720, %v736
        %v741 = vmul.f32 %v721, %v736
        %v742 = vmul.f32 %v722, %v736
        %v743 = vmul.f32 %v723, %v736
        %v744 = vmul.f32 %v724, %v736
        %v745 = vmul.f32 %v725, %v736
        %v746 = vmul.f32 %v726, %v736
        %v747 = vmul.f32 %v727, %v736
        %v748 = vmul.f32 %v728, %v736
        %v749 = vmul.f32 %v729, %v736
        %v750 = vmul.f32 %v730, %v736
        %v751 = vmul.f32 %v731, %v736
        %v752 = vmul.f32 %v732, %v736
        %v753 = vadd.f32 %v701, %v737
        %v754 = vadd.f32 %v702, %v738
        %v755 = vadd.f32 %v703, %v739
        %v756 = vadd.f32 %v704, %v740
        %v757 = vadd.f32 %v705, %v741
        %v758 = vadd.f32 %v706, %v742
        %v759 = vadd.f32 %v707, %v743
        %v760 = vadd.f32 %v708, %v744
        %v761 = vadd.f32 %v709, %v745
        %v762 = vadd.f32 %v710, %v746
        %v763 = vadd.f32 %v711, %v747
        %v764 = vadd.f32 %v712, %v748
        %v765 = vadd.f32 %v713, %v749
        %v766 = vadd.f32 %v714, %v750
        %v767 = vadd.f32 %v715, %v751
        %v768 = vadd.f32 %v716, %v752
        %v769 = vld [vmem:[%s664 + $0x2] sm:$0xff]
        %v770 = vld [vmem:[%s664 + $0x12] sm:$0xff]
        %v771 = vld [vmem:[%s664 + $0x22] sm:$0xff]
        %v772 = vld [vmem:[%s664 + $0x32] sm:$0xff]
        %v773 = vld [vmem:[%s664 + $0x42] sm:$0xff]
        %v774 = vld [vmem:[%s664 + $0x52] sm:$0xff]
        %v775 = vld [vmem:[%s664 + $0x62] sm:$0xff]
        %v776 = vld [vmem:[%s664 + $0x72] sm:$0xff]
        %v777 = vld [vmem:[%s664 + $0xa2] sm:$0xff]
        %v778 = vld [vmem:[%s664 + $0xb2] sm:$0xff]
        %v779 = vld [vmem:[%s664 + $0xc2] sm:$0xff]
        %v780 = vld [vmem:[%s664 + $0xd2] sm:$0xff]
        %v781 = vld [vmem:[%s664 + $0xe2] sm:$0xff]
        %v782 = vld [vmem:[%s664 + $0xf2] sm:$0xff]
        %v783 = vld [vmem:[%s664 + $0x102] sm:$0xff]
        %v784 = vld [vmem:[%s664 + $0x112] sm:$0xff]
        %v785 = vlaneseq
        %v786 = vshrl.u32 %v785, 7
        %v787 = vsub.s32 0, %v786
        %v788 = vrot.slane %v340, %v787
        %v789 = vmul.f32 %v769, %v788
        %v790 = vmul.f32 %v770, %v788
        %v791 = vmul.f32 %v771, %v788
        %v792 = vmul.f32 %v772, %v788
        %v793 = vmul.f32 %v773, %v788
        %v794 = vmul.f32 %v774, %v788
        %v795 = vmul.f32 %v775, %v788
        %v796 = vmul.f32 %v776, %v788
        %v797 = vmul.f32 %v777, %v788
        %v798 = vmul.f32 %v778, %v788
        %v799 = vmul.f32 %v779, %v788
        %v800 = vmul.f32 %v780, %v788
        %v801 = vmul.f32 %v781, %v788
        %v802 = vmul.f32 %v782, %v788
        %v803 = vmul.f32 %v783, %v788
        %v804 = vmul.f32 %v784, %v788
        %v805 = vadd.f32 %v753, %v789
        %v806 = vadd.f32 %v754, %v790
        %v807 = vadd.f32 %v755, %v791
        %v808 = vadd.f32 %v756, %v792
        %v809 = vadd.f32 %v757, %v793
        %v810 = vadd.f32 %v758, %v794
        %v811 = vadd.f32 %v759, %v795
        %v812 = vadd.f32 %v760, %v796
        %v813 = vadd.f32 %v761, %v797
        %v814 = vadd.f32 %v762, %v798
        %v815 = vadd.f32 %v763, %v799
        %v816 = vadd.f32 %v764, %v800
        %v817 = vadd.f32 %v765, %v801
        %v818 = vadd.f32 %v766, %v802
        %v819 = vadd.f32 %v767, %v803
        %v820 = vadd.f32 %v768, %v804
        %v821 = vmul.f32 %v805, 0.5
        %v822 = vmul.f32 %v806, 0.5
        %v823 = vmul.f32 %v807, 0.5
        %v824 = vmul.f32 %v808, 0.5
        %v825 = vmul.f32 %v809, 0.5
        %v826 = vmul.f32 %v810, 0.5
        %v827 = vmul.f32 %v811, 0.5
        %v828 = vmul.f32 %v812, 0.5
        %v829 = vmul.f32 %v813, 0.5
        %v830 = vmul.f32 %v814, 0.5
        %v831 = vmul.f32 %v815, 0.5
        %v832 = vmul.f32 %v816, 0.5
        %v833 = vmul.f32 %v817, 0.5
        %v834 = vmul.f32 %v818, 0.5
        %v835 = vmul.f32 %v819, 0.5
        %v836 = vmul.f32 %v820, 0.5
        %v837 = vmul.f32 %v805, 0.70710677
        %v838 = vmul.f32 %v806, 0.70710677
        %v839 = vmul.f32 %v807, 0.70710677
        %v840 = vmul.f32 %v808, 0.70710677
        %v841 = vmul.f32 %v809, 0.70710677
        %v842 = vmul.f32 %v810, 0.70710677
        %v843 = vmul.f32 %v811, 0.70710677
        %v844 = vmul.f32 %v812, 0.70710677
        %v845 = vmul.f32 %v813, 0.70710677
        %v846 = vmul.f32 %v814, 0.70710677
        %v847 = vmul.f32 %v815, 0.70710677
        %v848 = vmul.f32 %v816, 0.70710677
        %v849 = vmul.f32 %v817, 0.70710677
        %v850 = vmul.f32 %v818, 0.70710677
        %v851 = vmul.f32 %v819, 0.70710677
        %v852 = vmul.f32 %v820, 0.70710677
        %v853 = verf.f32.pop %v837
        %v854 = verf.f32.pop %v838
        %v855 = verf.f32.pop %v839
        %v856 = verf.f32.pop %v840
        %v857 = verf.f32.pop %v841
        %v858 = verf.f32.pop %v842
        %v859 = verf.f32.pop %v843
        %v860 = verf.f32.pop %v844
        %v861 = verf.f32.pop %v845
        %v862 = verf.f32.pop %v846
        %v863 = verf.f32.pop %v847
        %v864 = verf.f32.pop %v848
        %v865 = verf.f32.pop %v849
        %v866 = verf.f32.pop %v850
        %v867 = verf.f32.pop %v851
        %v868 = verf.f32.pop %v852
        %v869 = vadd.f32 %v853, 1.0
        %v870 = vadd.f32 %v854, 1.0
        %v871 = vadd.f32 %v855, 1.0
        %v872 = vadd.f32 %v856, 1.0
        %v873 = vadd.f32 %v857, 1.0
        %v874 = vadd.f32 %v858, 1.0
        %v875 = vadd.f32 %v859, 1.0
        %v876 = vadd.f32 %v860, 1.0
        %v877 = vadd.f32 %v861, 1.0
        %v878 = vadd.f32 %v862, 1.0
        %v879 = vadd.f32 %v863, 1.0
        %v880 = vadd.f32 %v864, 1.0
        %v881 = vadd.f32 %v865, 1.0
        %v882 = vadd.f32 %v866, 1.0
        %v883 = vadd.f32 %v867, 1.0
        %v884 = vadd.f32 %v868, 1.0
        %v885 = vmul.f32 %v821, %v869
        %v886 = vmul.f32 %v822, %v870
        %v887 = vmul.f32 %v823, %v871
        %v888 = vmul.f32 %v824, %v872
        %v889 = vmul.f32 %v825, %v873
        %v890 = vmul.f32 %v826, %v874
        %v891 = vmul.f32 %v827, %v875
        %v892 = vmul.f32 %v828, %v876
        %v893 = vmul.f32 %v829, %v877
        %v894 = vmul.f32 %v830, %v878
        %v895 = vmul.f32 %v831, %v879
        %v896 = vmul.f32 %v832, %v880
        %v897 = vmul.f32 %v833, %v881
        %v898 = vmul.f32 %v834, %v882
        %v899 = vmul.f32 %v835, %v883
        %v900 = vmul.f32 %v836, %v884
        %vm901 = vcmask 130048
        %v902 = vsel %vm901, %v885, 0.0
        %v903 = vsel %vm901, %v886, 0.0
        %v904 = vadd.f32 %v902, %v903
        %v905 = vsel %vm901, %v887, 0.0
        %v906 = vadd.f32 %v904, %v905
        %v907 = vsel %vm901, %v888, 0.0
        %v908 = vadd.f32 %v906, %v907
        %v909 = vsel %vm901, %v889, 0.0
        %v910 = vadd.f32 %v908, %v909
        %v911 = vsel %vm901, %v890, 0.0
        %v912 = vadd.f32 %v910, %v911
        %v913 = vsel %vm901, %v891, 0.0
        %v914 = vadd.f32 %v912, %v913
        %v915 = vsel %vm901, %v892, 0.0
        %v916 = vadd.f32 %v914, %v915
        %v917 = vsel %vm901, %v893, 0.0
        %v918 = vadd.f32 %v916, %v917
        %v919 = vsel %vm901, %v894, 0.0
        %v920 = vadd.f32 %v918, %v919
        %v921 = vsel %vm901, %v895, 0.0
        %v922 = vadd.f32 %v920, %v921
        %v923 = vsel %vm901, %v896, 0.0
        %v924 = vadd.f32 %v922, %v923
        %v925 = vsel %vm901, %v897, 0.0
        %v926 = vadd.f32 %v924, %v925
        %v927 = vsel %vm901, %v898, 0.0
        %v928 = vadd.f32 %v926, %v927
        %v929 = vsel %vm901, %v899, 0.0
        %v930 = vadd.f32 %v928, %v929
        %v931 = vsel %vm901, %v900, 0.0
        %v932 = vadd.f32 %v930, %v931
        %v933 = vrot.slane %v932, 4
        %v934 = vadd.f32 %v932, %v933
        %v935 = vrot.slane %v934, 2
        %v936 = vadd.f32 %v934, %v935
        %v937 = vrot.slane %v936, 1
        %v938 = vadd.f32 %v936, %v937
        %v939 = vmul.f32 %v885, %v885
        %v940 = vmul.f32 %v886, %v886
        %v941 = vmul.f32 %v887, %v887
        %v942 = vmul.f32 %v888, %v888
        %v943 = vmul.f32 %v889, %v889
        %v944 = vmul.f32 %v890, %v890
        %v945 = vmul.f32 %v891, %v891
        %v946 = vmul.f32 %v892, %v892
        %v947 = vmul.f32 %v893, %v893
        %v948 = vmul.f32 %v894, %v894
        %v949 = vmul.f32 %v895, %v895
        %v950 = vmul.f32 %v896, %v896
        %v951 = vmul.f32 %v897, %v897
        %v952 = vmul.f32 %v898, %v898
        %v953 = vmul.f32 %v899, %v899
        %v954 = vmul.f32 %v900, %v900
        %v955 = vsel %vm901, %v939, 0.0
        %v956 = vsel %vm901, %v940, 0.0
        %v957 = vadd.f32 %v955, %v956
        %v958 = vsel %vm901, %v941, 0.0
        %v959 = vadd.f32 %v957, %v958
        %v960 = vsel %vm901, %v942, 0.0
        %v961 = vadd.f32 %v959, %v960
        %v962 = vsel %vm901, %v943, 0.0
        %v963 = vadd.f32 %v961, %v962
        %v964 = vsel %vm901, %v944, 0.0
        %v965 = vadd.f32 %v963, %v964
        %v966 = vsel %vm901, %v945, 0.0
        %v967 = vadd.f32 %v965, %v966
        %v968 = vsel %vm901, %v946, 0.0
        %v969 = vadd.f32 %v967, %v968
        %v970 = vsel %vm901, %v947, 0.0
        %v971 = vadd.f32 %v969, %v970
        %v972 = vsel %vm901, %v948, 0.0
        %v973 = vadd.f32 %v971, %v972
        %v974 = vsel %vm901, %v949, 0.0
        %v975 = vadd.f32 %v973, %v974
        %v976 = vsel %vm901, %v950, 0.0
        %v977 = vadd.f32 %v975, %v976
        %v978 = vsel %vm901, %v951, 0.0
        %v979 = vadd.f32 %v977, %v978
        %v980 = vsel %vm901, %v952, 0.0
        %v981 = vadd.f32 %v979, %v980
        %v982 = vsel %vm901, %v953, 0.0
        %v983 = vadd.f32 %v981, %v982
        %v984 = vsel %vm901, %v954, 0.0
        %v985 = vadd.f32 %v983, %v984
        %v986 = vrot.slane %v985, 4
        %v987 = vadd.f32 %v985, %v986
        %v988 = vrot.slane %v987, 2
        %v989 = vadd.f32 %v987, %v988
        %v990 = vrot.slane %v989, 1
        %v991 = vadd.f32 %v989, %v990
        %v992 = vrcp.pop 128.0
        %v993 = vmul.f32 %v938, %v992
        %v994 = vmul.f32 %v991, %v992
        %v995 = vmul.f32 %v993, %v993
        %v996 = vsub.f32 %v994, %v995
        %v997 = vsub.f32 %v885, %v993
        %v998 = vsub.f32 %v886, %v993
        %v999 = vsub.f32 %v887, %v993
        %v1000 = vsub.f32 %v888, %v993
        %v1001 = vsub.f32 %v889, %v993
        %v1002 = vsub.f32 %v890, %v993
        %v1003 = vsub.f32 %v891, %v993
        %v1004 = vsub.f32 %v892, %v993
        %v1005 = vsub.f32 %v893, %v993
        %v1006 = vsub.f32 %v894, %v993
        %v1007 = vsub.f32 %v895, %v993
        %v1008 = vsub.f32 %v896, %v993
        %v1009 = vsub.f32 %v897, %v993
        %v1010 = vsub.f32 %v898, %v993
        %v1011 = vsub.f32 %v899, %v993
        %v1012 = vsub.f32 %v900, %v993
        %v1013 = vadd.f32 %v996, 1e-05
        %v1014 = vrsqrt.pop %v1013
        %v1015 = vmul.f32 %v997, %v1014
        %v1016 = vmul.f32 %v998, %v1014
        %v1017 = vmul.f32 %v999, %v1014
        %v1018 = vmul.f32 %v1000, %v1014
        %v1019 = vmul.f32 %v1001, %v1014
        %v1020 = vmul.f32 %v1002, %v1014
        %v1021 = vmul.f32 %v1003, %v1014
        %v1022 = vmul.f32 %v1004, %v1014
        %v1023 = vmul.f32 %v1005, %v1014
        %v1024 = vmul.f32 %v1006, %v1014
        %v1025 = vmul.f32 %v1007, %v1014
        %v1026 = vmul.f32 %v1008, %v1014
        %v1027 = vmul.f32 %v1009, %v1014
        %v1028 = vmul.f32 %v1010, %v1014
        %v1029 = vmul.f32 %v1011, %v1014
        %v1030 = vmul.f32 %v1012, %v1014
        %v1031 = vadd.f32 %v1015, %v560
        %v1032 = vadd.f32 %v1016, %v561
        %v1033 = vadd.f32 %v1017, %v562
        %v1034 = vadd.f32 %v1018, %v563
        %v1035 = vadd.f32 %v1019, %v564
        %v1036 = vadd.f32 %v1020, %v565
        %v1037 = vadd.f32 %v1021, %v566
        %v1038 = vadd.f32 %v1022, %v567
        %v1039 = vadd.f32 %v1023, %v568
        %v1040 = vadd.f32 %v1024, %v569
        %v1041 = vadd.f32 %v1025, %v570
        %v1042 = vadd.f32 %v1026, %v571
        %v1043 = vadd.f32 %v1027, %v572
        %v1044 = vadd.f32 %v1028, %v573
        %v1045 = vadd.f32 %v1029, %v574
        %v1046 = vadd.f32 %v1030, %v575
        %v1047 = vpack.c.bf16 %v1032, %v1031
        %v1048 = vpack.c.bf16 %v1034, %v1033
        %v1049 = vpack.c.bf16 %v1036, %v1035
        %v1050 = vpack.c.bf16 %v1038, %v1037
        %v1051 = vpack.c.bf16 %v1040, %v1039
        %v1052 = vpack.c.bf16 %v1042, %v1041
        %v1053 = vpack.c.bf16 %v1044, %v1043
        %v1054 = vpack.c.bf16 %v1046, %v1045
        %v1055 = vpack.c.bf16 %v343, %v342
        %v1057 = vlaneseq
        %v1058 = vshrl.u32 %v1057, 7
        %v1059 = vsub.s32 0, %v1058
        %v1060 = vrot.slane %v344, %v1059
        %v1063 = vsel %vm901, %v1047, 0
        %v1066 = vsel %vm901, %v1048, 0
        %v1069 = vsel %vm901, %v1049, 0
        %v1072 = vsel %vm901, %v1050, 0
        %v1075 = vsel %vm901, %v1051, 0
        %v1078 = vsel %vm901, %v1052, 0
        %v1081 = vsel %vm901, %v1053, 0
        %v1084 = vsel %vm901, %v1054, 0
        %1086 = vmatprep.subr.bf16.mxu0 0
        %1087 = vmatpush1.bf16.msra.mxu0 %v1055
        %1088 = vmatprep.subr.bf16.mxu0 0
        %1089 = vmatpush1.bf16.msra.mxu0 0
        %1090 = vmatprep.subr.bf16.mxu0 0
        %1091 = vmatpush1.bf16.msra.mxu0 0
        %1092 = vmatprep.subr.bf16.mxu0 0
        %1093 = vmatpush1.bf16.msra.mxu0 0
        %1094 = vmatprep.subr.bf16.mxu0 0
        %1095 = vmatpush1.bf16.msra.mxu0 0
        %1096 = vmatprep.subr.bf16.mxu0 0
        %1097 = vmatpush1.bf16.msra.mxu0 0
        %1098 = vmatprep.subr.bf16.mxu0 0
        %1099 = vmatpush1.bf16.msra.mxu0 0
        %1100 = vmatprep.subr.bf16.mxu0 0
        %1101 = vmatpush1.bf16.msra.mxu0 0
        %1102 = vmatprep.subr.bf16.mxu0 0
        %1103 = vmatpush1.bf16.msra.mxu0 0
        %1104 = vmatprep.subr.bf16.mxu0 0
        %1105 = vmatpush1.bf16.msra.mxu0 0
        %1106 = vmatprep.subr.bf16.mxu0 0
        %1107 = vmatpush1.bf16.msra.mxu0 0
        %1108 = vmatprep.subr.bf16.mxu0 0
        %1109 = vmatpush1.bf16.msra.mxu0 0
        %1110 = vmatprep.subr.bf16.mxu0 0
        %1111 = vmatpush1.bf16.msra.mxu0 0
        %1112 = vmatprep.subr.bf16.mxu0 0
        %1113 = vmatpush1.bf16.msra.mxu0 0
        %1114 = vmatprep.subr.bf16.mxu0 0
        %1115 = vmatpush1.bf16.msra.mxu0 0
        %1116 = vmatprep.subr.bf16.mxu0 0
        %1117 = vmatpush1.bf16.msra.mxu0 0
        %1118 = vmatprep.mubr.bf16.mxu0 0
        %1119 = vmatmul.mubr.bf16.gmra.mrb[0].mxu0 %v1063
        %v1120 = vpop.f32.mrb[0].mxu0
        %v1121 = vadd.f32 %v1060, %v1120
        %v1122 = vpop.f32.mrb[0].mxu0
        %v1123 = vpop.f32.mrb[0].mxu0
        %v1124 = vadd.f32 %v1060, %v1123
        %v1125 = vpop.f32.mrb[0].mxu0
        %1126 = vmatprep.mubr.bf16.mxu0 0
        %1127 = vmatmul.mubr.bf16.gmra.mrb[0].mxu0 %v1066
        %v1128 = vpop.f32.mrb[0].mxu0
        %v1129 = vadd.f32 %v1060, %v1128
        %v1130 = vpop.f32.mrb[0].mxu0
        %v1131 = vpop.f32.mrb[0].mxu0
        %v1132 = vadd.f32 %v1060, %v1131
        %v1133 = vpop.f32.mrb[0].mxu0
        %1134 = vmatprep.mubr.bf16.mxu0 0
        %1135 = vmatmul.mubr.bf16.gmra.mrb[0].mxu0 %v1069
        %v1136 = vpop.f32.mrb[0].mxu0
        %v1137 = vadd.f32 %v1060, %v1136
        %v1138 = vpop.f32.mrb[0].mxu0
        %v1139 = vpop.f32.mrb[0].mxu0
        %v1140 = vadd.f32 %v1060, %v1139
        %v1141 = vpop.f32.mrb[0].mxu0
        %1142 = vmatprep.mubr.bf16.mxu0 0
        %1143 = vmatmul.mubr.bf16.gmra.mrb[0].mxu0 %v1072
        %v1144 = vpop.f32.mrb[0].mxu0
        %v1145 = vadd.f32 %v1060, %v1144
        %v1146 = vpop.f32.mrb[0].mxu0
        %v1147 = vpop.f32.mrb[0].mxu0
        %v1148 = vadd.f32 %v1060, %v1147
        %v1149 = vpop.f32.mrb[0].mxu0
        %1150 = vmatprep.mubr.bf16.mxu0 0
        %1151 = vmatmul.mubr.bf16.gmra.mrb[0].mxu0 %v1075
        %v1152 = vpop.f32.mrb[0].mxu0
        %v1153 = vadd.f32 %v1060, %v1152
        %v1154 = vpop.f32.mrb[0].mxu0
        %v1155 = vpop.f32.mrb[0].mxu0
        %v1156 = vadd.f32 %v1060, %v1155
        %v1157 = vpop.f32.mrb[0].mxu0
        %1158 = vmatprep.mubr.bf16.mxu0 0
        %1159 = vmatmul.mubr.bf16.gmra.mrb[0].mxu0 %v1078
        %v1160 = vpop.f32.mrb[0].mxu0
        %v1161 = vadd.f32 %v1060, %v1160
        %v1162 = vpop.f32.mrb[0].mxu0
        %v1163 = vpop.f32.mrb[0].mxu0
        %v1164 = vadd.f32 %v1060, %v1163
        %v1165 = vpop.f32.mrb[0].mxu0
        %1166 = vmatprep.mubr.bf16.mxu0 0
        %1167 = vmatmul.mubr.bf16.gmra.mrb[0].mxu0 %v1081
        %v1168 = vpop.f32.mrb[0].mxu0
        %v1169 = vadd.f32 %v1060, %v1168
        %v1170 = vpop.f32.mrb[0].mxu0
        %v1171 = vpop.f32.mrb[0].mxu0
        %v1172 = vadd.f32 %v1060, %v1171
        %v1173 = vpop.f32.mrb[0].mxu0
        %1174 = vmatprep.mubr.bf16.mxu0 0
        %1175 = vmatmul.mubr.bf16.gmra.mrb[0].mxu0 %v1084
        %v1176 = vpop.f32.mrb[0].mxu0
        %v1177 = vadd.f32 %v1060, %v1176
        %v1178 = vpop.f32.mrb[0].mxu0
        %v1179 = vpop.f32.mrb[0].mxu0
        %v1180 = vadd.f32 %v1060, %v1179
        %v1181 = vpop.f32.mrb[0].mxu0
        %1182 = vdwg.mxu0
        %v1183 = vmul.f32 %v1121, 0.5
        %v1184 = vmul.f32 %v1124, 0.5
        %v1185 = vmul.f32 %v1129, 0.5
        %v1186 = vmul.f32 %v1132, 0.5
        %v1187 = vmul.f32 %v1137, 0.5
        %v1188 = vmul.f32 %v1140, 0.5
        %v1189 = vmul.f32 %v1145, 0.5
        %v1190 = vmul.f32 %v1148, 0.5
        %v1191 = vmul.f32 %v1153, 0.5
        %v1192 = vmul.f32 %v1156, 0.5
        %v1193 = vmul.f32 %v1161, 0.5
        %v1194 = vmul.f32 %v1164, 0.5
        %v1195 = vmul.f32 %v1169, 0.5
        %v1196 = vmul.f32 %v1172, 0.5
        %v1197 = vmul.f32 %v1177, 0.5
        %v1198 = vmul.f32 %v1180, 0.5
        %v1199 = vmul.f32 %v1121, 0.70710677
        %v1200 = vmul.f32 %v1124, 0.70710677
        %v1201 = vmul.f32 %v1129, 0.70710677
        %v1202 = vmul.f32 %v1132, 0.70710677
        %v1203 = vmul.f32 %v1137, 0.70710677
        %v1204 = vmul.f32 %v1140, 0.70710677
        %v1205 = vmul.f32 %v1145, 0.70710677
        %v1206 = vmul.f32 %v1148, 0.70710677
        %v1207 = vmul.f32 %v1153, 0.70710677
        %v1208 = vmul.f32 %v1156, 0.70710677
        %v1209 = vmul.f32 %v1161, 0.70710677
        %v1210 = vmul.f32 %v1164, 0.70710677
        %v1211 = vmul.f32 %v1169, 0.70710677
        %v1212 = vmul.f32 %v1172, 0.70710677
        %v1213 = vmul.f32 %v1177, 0.70710677
        %v1214 = vmul.f32 %v1180, 0.70710677
        %v1215 = verf.f32.pop %v1199
        %v1216 = verf.f32.pop %v1200
        %v1217 = verf.f32.pop %v1201
        %v1218 = verf.f32.pop %v1202
        %v1219 = verf.f32.pop %v1203
        %v1220 = verf.f32.pop %v1204
        %v1221 = verf.f32.pop %v1205
        %v1222 = verf.f32.pop %v1206
        %v1223 = verf.f32.pop %v1207
        %v1224 = verf.f32.pop %v1208
        %v1225 = verf.f32.pop %v1209
        %v1226 = verf.f32.pop %v1210
        %v1227 = verf.f32.pop %v1211
        %v1228 = verf.f32.pop %v1212
        %v1229 = verf.f32.pop %v1213
        %v1230 = verf.f32.pop %v1214
        %v1231 = vadd.f32 %v1215, 1.0
        %v1232 = vadd.f32 %v1216, 1.0
        %v1233 = vadd.f32 %v1217, 1.0
        %v1234 = vadd.f32 %v1218, 1.0
        %v1235 = vadd.f32 %v1219, 1.0
        %v1236 = vadd.f32 %v1220, 1.0
        %v1237 = vadd.f32 %v1221, 1.0
        %v1238 = vadd.f32 %v1222, 1.0
        %v1239 = vadd.f32 %v1223, 1.0
        %v1240 = vadd.f32 %v1224, 1.0
        %v1241 = vadd.f32 %v1225, 1.0
        %v1242 = vadd.f32 %v1226, 1.0
        %v1243 = vadd.f32 %v1227, 1.0
        %v1244 = vadd.f32 %v1228, 1.0
        %v1245 = vadd.f32 %v1229, 1.0
        %v1246 = vadd.f32 %v1230, 1.0
        %v1247 = vmul.f32 %v1183, %v1231
        %v1248 = vmul.f32 %v1184, %v1232
        %v1249 = vmul.f32 %v1185, %v1233
        %v1250 = vmul.f32 %v1186, %v1234
        %v1251 = vmul.f32 %v1187, %v1235
        %v1252 = vmul.f32 %v1188, %v1236
        %v1253 = vmul.f32 %v1189, %v1237
        %v1254 = vmul.f32 %v1190, %v1238
        %v1255 = vmul.f32 %v1191, %v1239
        %v1256 = vmul.f32 %v1192, %v1240
        %v1257 = vmul.f32 %v1193, %v1241
        %v1258 = vmul.f32 %v1194, %v1242
        %v1259 = vmul.f32 %v1195, %v1243
        %v1260 = vmul.f32 %v1196, %v1244
        %v1261 = vmul.f32 %v1197, %v1245
        %v1262 = vmul.f32 %v1198, %v1246
        %v1263 = vsel %vm901, %v1247, 0.0
        %v1264 = vsel %vm901, %v1248, 0.0
        %v1265 = vadd.f32 %v1263, %v1264
        %v1266 = vsel %vm901, %v1249, 0.0
        %v1267 = vadd.f32 %v1265, %v1266
        %v1268 = vsel %vm901, %v1250, 0.0
        %v1269 = vadd.f32 %v1267, %v1268
        %v1270 = vsel %vm901, %v1251, 0.0
        %v1271 = vadd.f32 %v1269, %v1270
        %v1272 = vsel %vm901, %v1252, 0.0
        %v1273 = vadd.f32 %v1271, %v1272
        %v1274 = vsel %vm901, %v1253, 0.0
        %v1275 = vadd.f32 %v1273, %v1274
        %v1276 = vsel %vm901, %v1254, 0.0
        %v1277 = vadd.f32 %v1275, %v1276
        %v1278 = vsel %vm901, %v1255, 0.0
        %v1279 = vadd.f32 %v1277, %v1278
        %v1280 = vsel %vm901, %v1256, 0.0
        %v1281 = vadd.f32 %v1279, %v1280
        %v1282 = vsel %vm901, %v1257, 0.0
        %v1283 = vadd.f32 %v1281, %v1282
        %v1284 = vsel %vm901, %v1258, 0.0
        %v1285 = vadd.f32 %v1283, %v1284
        %v1286 = vsel %vm901, %v1259, 0.0
        %v1287 = vadd.f32 %v1285, %v1286
        %v1288 = vsel %vm901, %v1260, 0.0
        %v1289 = vadd.f32 %v1287, %v1288
        %v1290 = vsel %vm901, %v1261, 0.0
        %v1291 = vadd.f32 %v1289, %v1290
        %v1292 = vsel %vm901, %v1262, 0.0
        %v1293 = vadd.f32 %v1291, %v1292
        %v1294 = vrot.slane %v1293, 4
        %v1295 = vadd.f32 %v1293, %v1294
        %v1296 = vrot.slane %v1295, 2
        %v1297 = vadd.f32 %v1295, %v1296
        %v1298 = vrot.slane %v1297, 1
        %v1299 = vadd.f32 %v1297, %v1298
        %v1300 = vmul.f32 %v1247, %v1247
        %v1301 = vmul.f32 %v1248, %v1248
        %v1302 = vmul.f32 %v1249, %v1249
        %v1303 = vmul.f32 %v1250, %v1250
        %v1304 = vmul.f32 %v1251, %v1251
        %v1305 = vmul.f32 %v1252, %v1252
        %v1306 = vmul.f32 %v1253, %v1253
        %v1307 = vmul.f32 %v1254, %v1254
        %v1308 = vmul.f32 %v1255, %v1255
        %v1309 = vmul.f32 %v1256, %v1256
        %v1310 = vmul.f32 %v1257, %v1257
        %v1311 = vmul.f32 %v1258, %v1258
        %v1312 = vmul.f32 %v1259, %v1259
        %v1313 = vmul.f32 %v1260, %v1260
        %v1314 = vmul.f32 %v1261, %v1261
        %v1315 = vmul.f32 %v1262, %v1262
        %v1316 = vsel %vm901, %v1300, 0.0
        %v1317 = vsel %vm901, %v1301, 0.0
        %v1318 = vadd.f32 %v1316, %v1317
        %v1319 = vsel %vm901, %v1302, 0.0
        %v1320 = vadd.f32 %v1318, %v1319
        %v1321 = vsel %vm901, %v1303, 0.0
        %v1322 = vadd.f32 %v1320, %v1321
        %v1323 = vsel %vm901, %v1304, 0.0
        %v1324 = vadd.f32 %v1322, %v1323
        %v1325 = vsel %vm901, %v1305, 0.0
        %v1326 = vadd.f32 %v1324, %v1325
        %v1327 = vsel %vm901, %v1306, 0.0
        %v1328 = vadd.f32 %v1326, %v1327
        %v1329 = vsel %vm901, %v1307, 0.0
        %v1330 = vadd.f32 %v1328, %v1329
        %v1331 = vsel %vm901, %v1308, 0.0
        %v1332 = vadd.f32 %v1330, %v1331
        %v1333 = vsel %vm901, %v1309, 0.0
        %v1334 = vadd.f32 %v1332, %v1333
        %v1335 = vsel %vm901, %v1310, 0.0
        %v1336 = vadd.f32 %v1334, %v1335
        %v1337 = vsel %vm901, %v1311, 0.0
        %v1338 = vadd.f32 %v1336, %v1337
        %v1339 = vsel %vm901, %v1312, 0.0
        %v1340 = vadd.f32 %v1338, %v1339
        %v1341 = vsel %vm901, %v1313, 0.0
        %v1342 = vadd.f32 %v1340, %v1341
        %v1343 = vsel %vm901, %v1314, 0.0
        %v1344 = vadd.f32 %v1342, %v1343
        %v1345 = vsel %vm901, %v1315, 0.0
        %v1346 = vadd.f32 %v1344, %v1345
        %v1347 = vrot.slane %v1346, 4
        %v1348 = vadd.f32 %v1346, %v1347
        %v1349 = vrot.slane %v1348, 2
        %v1350 = vadd.f32 %v1348, %v1349
        %v1351 = vrot.slane %v1350, 1
        %v1352 = vadd.f32 %v1350, %v1351
        %v1353 = vmul.f32 %v1299, %v992
        %v1354 = vmul.f32 %v1352, %v992
        %v1355 = vmul.f32 %v1353, %v1353
        %v1356 = vsub.f32 %v1354, %v1355
        %v1357 = vsub.f32 %v1247, %v1353
        %v1358 = vsub.f32 %v1248, %v1353
        %v1359 = vsub.f32 %v1249, %v1353
        %v1360 = vsub.f32 %v1250, %v1353
        %v1361 = vsub.f32 %v1251, %v1353
        %v1362 = vsub.f32 %v1252, %v1353
        %v1363 = vsub.f32 %v1253, %v1353
        %v1364 = vsub.f32 %v1254, %v1353
        %v1365 = vsub.f32 %v1255, %v1353
        %v1366 = vsub.f32 %v1256, %v1353
        %v1367 = vsub.f32 %v1257, %v1353
        %v1368 = vsub.f32 %v1258, %v1353
        %v1369 = vsub.f32 %v1259, %v1353
        %v1370 = vsub.f32 %v1260, %v1353
        %v1371 = vsub.f32 %v1261, %v1353
        %v1372 = vsub.f32 %v1262, %v1353
        %v1373 = vadd.f32 %v1356, 1e-05
        %v1374 = vrsqrt.pop %v1373
        %v1375 = vmul.f32 %v1357, %v1374
        %v1376 = vmul.f32 %v1358, %v1374
        %v1377 = vmul.f32 %v1359, %v1374
        %v1378 = vmul.f32 %v1360, %v1374
        %v1379 = vmul.f32 %v1361, %v1374
        %v1380 = vmul.f32 %v1362, %v1374
        %v1381 = vmul.f32 %v1363, %v1374
        %v1382 = vmul.f32 %v1364, %v1374
        %v1383 = vmul.f32 %v1365, %v1374
        %v1384 = vmul.f32 %v1366, %v1374
        %v1385 = vmul.f32 %v1367, %v1374
        %v1386 = vmul.f32 %v1368, %v1374
        %v1387 = vmul.f32 %v1369, %v1374
        %v1388 = vmul.f32 %v1370, %v1374
        %v1389 = vmul.f32 %v1371, %v1374
        %v1390 = vmul.f32 %v1372, %v1374
        %1391 = vst.msk [vmem:[%s507 + $0x1] sm:$0xff] %vm901, %v1375
        %1392 = vst.msk [vmem:[%s507 + $0x11] sm:$0xff] %vm901, %v1376
        %1393 = vst.msk [vmem:[%s507 + $0x21] sm:$0xff] %vm901, %v1377
        %1394 = vst.msk [vmem:[%s507 + $0x31] sm:$0xff] %vm901, %v1378
        %1395 = vst.msk [vmem:[%s507 + $0x41] sm:$0xff] %vm901, %v1379
        %1396 = vst.msk [vmem:[%s507 + $0x51] sm:$0xff] %vm901, %v1380
        %1397 = vst.msk [vmem:[%s507 + $0x61] sm:$0xff] %vm901, %v1381
        %1398 = vst.msk [vmem:[%s507 + $0x71] sm:$0xff] %vm901, %v1382
        %1399 = vst.msk [vmem:[%s507 + $0xa1] sm:$0xff] %vm901, %v1383
        %1400 = vst.msk [vmem:[%s507 + $0xb1] sm:$0xff] %vm901, %v1384
        %1401 = vst.msk [vmem:[%s507 + $0xc1] sm:$0xff] %vm901, %v1385
        %1402 = vst.msk [vmem:[%s507 + $0xd1] sm:$0xff] %vm901, %v1386
        %1403 = vst.msk [vmem:[%s507 + $0xe1] sm:$0xff] %vm901, %v1387
        %1404 = vst.msk [vmem:[%s507 + $0xf1] sm:$0xff] %vm901, %v1388
        %1405 = vst.msk [vmem:[%s507 + $0x101] sm:$0xff] %vm901, %v1389
        %1406 = vst.msk [vmem:[%s507 + $0x111] sm:$0xff] %vm901, %v1390
        %p1407 = scmp.eq.s32.totalorder %s17, 1
        // Predicated region
        $region45: #{conv_mixer_layer.1} parent=39 // pred_check
          %p1408 = pneg %p1407
        $region46: #{conv_mixer_layer.1} parent=39 // pred_check_branch
          %1410 = sbr.rel (%p1408) target = $region48
        $region47: #{conv_mixer_layer.1} parent=39 // pred_region
          %1411 = vst.msk [vmem:[#allocation3] sm:$0xff] %vm901, %v1375
          %1412 = vst.msk [vmem:[#allocation3 + $0x8] sm:$0xff] %vm901, %v1376
          %1413 = vst.msk [vmem:[#allocation3 + $0x10] sm:$0xff] %vm901, %v1377
          %1414 = vst.msk [vmem:[#allocation3 + $0x18] sm:$0xff] %vm901, %v1378
          %1415 = vst.msk [vmem:[#allocation3 + $0x20] sm:$0xff] %vm901, %v1379
          %1416 = vst.msk [vmem:[#allocation3 + $0x28] sm:$0xff] %vm901, %v1380
          %1417 = vst.msk [vmem:[#allocation3 + $0x30] sm:$0xff] %vm901, %v1381
          %1418 = vst.msk [vmem:[#allocation3 + $0x38] sm:$0xff] %vm901, %v1382
          %1419 = vst.msk [vmem:[#allocation3 + $0x40] sm:$0xff] %vm901, %v1383
          %1420 = vst.msk [vmem:[#allocation3 + $0x48] sm:$0xff] %vm901, %v1384
          %1421 = vst.msk [vmem:[#allocation3 + $0x50] sm:$0xff] %vm901, %v1385
          %1422 = vst.msk [vmem:[#allocation3 + $0x58] sm:$0xff] %vm901, %v1386
          %1423 = vst.msk [vmem:[#allocation3 + $0x60] sm:$0xff] %vm901, %v1387
          %1424 = vst.msk [vmem:[#allocation3 + $0x68] sm:$0xff] %vm901, %v1388
          %1425 = vst.msk [vmem:[#allocation3 + $0x70] sm:$0xff] %vm901, %v1389
          %1426 = vst.msk [vmem:[#allocation3 + $0x78] sm:$0xff] %vm901, %v1390
        $region48: #{conv_mixer_layer.1} parent=39 // pred_fallthru
          _
        // Predicated region
        $region49: #{conv_mixer_layer.1} parent=39 // pred_check
          %p1427 = pneg %p155
        $region50: #{conv_mixer_layer.1} parent=39 // pred_check_branch
          %1429 = sbr.rel (%p1427) target = $region52
        $region51: #{conv_mixer_layer.1} parent=39 // pred_region
          %s1431 = ssub.s32 2048, 2048
          %1432 = vsyncadd [#allocation4], %s1431
          %s1433 = sshll.u32 [#allocation3], 4
          %s1434 = int_to_ptr.vmem [resolvable:$true] %s1433
          %1439 = dma.vmem_to_hbm [thread:$0]  %s1434, 2048, %s5, [#allocation4], 128, 128, 8
        $region52: #{conv_mixer_layer.1} parent=39 // pred_fallthru
          _
        // Predicated region
        $region53: #{conv_mixer_layer.1} parent=39 // pred_check
          %p1440 = pneg %p155
        $region54: #{conv_mixer_layer.1} parent=39 // pred_check_branch
          %1442 = sbr.rel (%p1440) target = $region56
        $region55: #{conv_mixer_layer.1} parent=39 // pred_region
          %1443 = dma.done [#allocation4], 2048
        $region56: #{conv_mixer_layer.1} parent=39 // pred_fallthru
          _
      $region40: #{conv_mixer_layer.1} parent=5 // pred_fallthru
        _
      %p1444 = scmp.le.s32.totalorder 2, %s12
      // Predicated region
      $region57: #{conv_mixer_layer.1} parent=5 // pred_check
        %p1445 = pneg %p1444
      $region58: #{conv_mixer_layer.1} parent=5 // pred_check_branch
        %1447 = sbr.rel (%p1445) target = $region60
      $region59: #{conv_mixer_layer.1} parent=5 // pred_region
        %s1448 = ssub.s32 %s12, 2
      $region60: #{conv_mixer_layer.1} parent=5 // pred_fallthru
        _
    $region6: #{conv_mixer_layer.1} parent=1 // loop_footer
      %s16 = sadd.s32 1, %s12
    $region7: #{conv_mixer_layer.1} parent=1 // loop_footer_branch
      %11 = sbr.rel target = $region3
    $region8: #{conv_mixer_layer.1} parent=1 // loop_exit
      _
    %1449 = vsyncpa [#allocation4], 1
    %s1450 = scalar_lea.sflag [#allocation4], 1
    %1451 = vsyncpa %s1450, 1

</llo_original>
